<compile_context>
chip_gen: v6e
topology: v6e:2x2x1
jax: 0.10.0
libtpu: 0.0.40
codegen_flags: <defaults>
</compile_context>

<pallas_src>
import functools

import jax
import jax.numpy as jnp
from jax.experimental import pallas as pl
from jax.experimental.pallas import tpu as pltpu


def _dconv_fused_kernel(x_ref, w_ref, t_ref, o_ref, pbuf, cols,
                        *, height, width, cin, dilations, interior_off, padlanes):
    """Fused 3x (dilated 3x3 conv + folded-BN shift + ReLU) for one image.

    All activations are channel-major and lane-dense:
      x_ref : (C, H*W)        input image
      w_ref : (3, C, 9C)      per-layer weights, BN scale folded, (Cout, kh*kw*Cin)
      t_ref : (3, C, 1)       per-layer per-channel shifts
      o_ref : (C, H*W)        output block
      pbuf  : (C, padlanes)   row-padded scratch; halo lanes stay zero
      cols  : (9C, H*W)       im2col scratch (fully overwritten every layer)
    """
    hw = height * width

    # Zero only the halo lanes (left/right of the interior window).  Dense,
    # lane-aligned stores, done every grid step so correctness does not depend
    # on scratch persistence when the batch axis is split across TensorCores.
    pbuf[:, pl.ds(0, interior_off)] = jnp.zeros((cin, interior_off), jnp.float32)
    tail = padlanes - interior_off - hw
    if tail > 0:
        pbuf[:, pl.ds(interior_off + hw, tail)] = jnp.zeros((cin, tail), jnp.float32)

    # Column-validity masks for horizontal taps; depend only on the shift dx,
    # hoisted out of the layer loop (d=2 masks reused by layers 0 and 2).
    col_idx = jax.lax.broadcasted_iota(jnp.int32, (1, hw), 1) % width
    col_mask = {}
    for d in set(dilations):
        col_mask[-d] = col_idx >= d              # col - d >= 0
        col_mask[d] = col_idx < (width - d)      # col + d <  W

    cur = x_ref[...].astype(jnp.float32)         # (C, H*W)

    for l, d in enumerate(dilations):
        # Current activation into the lane-aligned interior of the padded buffer.
        # Halo lanes are never written, so out-of-image rows read back as zero.
        pbuf[:, pl.ds(interior_off, hw)] = cur

        # im2col: nine dilated taps, each a lane-shifted (C, H*W) view of pbuf,
        # column-masked where the shift wraps across a row, written tap-by-tap
        # into the cols scratch.
        k = 0
        for dy in (-d, 0, d):
            for dx in (-d, 0, d):
                if dy == 0 and dx == 0:
                    tap = cur
                else:
                    tap = pbuf[:, pl.ds(interior_off + dy * width + dx, hw)]
                    if dx != 0:
                        tap = jnp.where(col_mask[dx], tap, 0.0)
                cols[pl.ds(k * cin, cin), :] = tap
                k += 1

        # One (C, 9C) @ (9C, H*W) matmul per layer; BN scale pre-folded into w.
        y = jax.lax.dot_general(w_ref[l], cols[...], (((1,), (0,)), ((), ())),
                                preferred_element_type=jnp.float32)   # (C, H*W)
        cur = jnp.maximum(y + t_ref[l], 0.0)                          # shift + ReLU

    o_ref[...] = cur.astype(o_ref.dtype)          # lane-dense (C, H*W) store


def dconv_forward(x_nchw, params):
    """DConv.forward. Input/output in PyTorch NCHW layout."""
    n, c, h, w = x_nchw.shape
    hw = h * w
    dilations = tuple(int(p[3]) for p in params)
    assert len(dilations) == 3
    dmax = max(dilations)

    # Padded-buffer geometry: the interior starts at a multiple of 128 lanes so
    # the per-layer interior store is a dense unmasked vst; the halo on either
    # side covers the largest row shift (dmax rows) plus the largest col shift.
    margin = dmax * w + dmax
    interior_off = ((margin + 127) // 128) * 128
    padlanes = -(-(interior_off + hw + margin) // 128) * 128

    # Fold BN scale into conv weights; flatten HWIO (3,3,C,C) -> (C, 9C) so each
    # layer is a single K = 9C matmul in transposed (Cout, H*W) form.
    w_t, shifts = [], []
    for (wgt, scale, shift, _d) in params:
        wf = (wgt * scale[None, None, None, :]).reshape(9 * c, c)        # (9C, C)
        w_t.append(jnp.transpose(wf, (1, 0)).astype(jnp.float32))        # (C, 9C)
        shifts.append(shift.astype(jnp.float32))
    w_all = jnp.stack(w_t, axis=0)                                       # (3, C, 9C)
    t_all = jnp.stack(shifts, axis=0)[:, :, None]                        # (3, C, 1)

    # Channel-major, lane-dense input: (N, C, H*W) is a free reshape of NCHW.
    x_flat = x_nchw.reshape(n, c, hw).astype(jnp.float32)

    kernel = functools.partial(
        _dconv_fused_kernel, height=h, width=w, cin=c, dilations=dilations,
        interior_off=interior_off, padlanes=padlanes)

    out_flat = pl.pallas_call(
        kernel,
        out_shape=jax.ShapeDtypeStruct((n, c, hw), x_nchw.dtype),
        grid_spec=pltpu.PrefetchScalarGridSpec(
            num_scalar_prefetch=0,
            grid=(n,),
            in_specs=[
                pl.BlockSpec((pl.Squeezed(), c, hw), lambda ni: (ni, 0, 0)),
                pl.BlockSpec((3, c, 9 * c), lambda ni: (0, 0, 0)),
                pl.BlockSpec((3, c, 1), lambda ni: (0, 0, 0)),
            ],
            out_specs=pl.BlockSpec((pl.Squeezed(), c, hw), lambda ni: (ni, 0, 0)),
            scratch_shapes=[
                pltpu.VMEM((c, padlanes), jnp.float32),      # row-padded activations
                pltpu.VMEM((9 * c, hw), jnp.float32),        # im2col columns
            ],
        ),
        compiler_params=pltpu.CompilerParams(
            dimension_semantics=("parallel",)),
    )(x_flat, w_all, t_all)

    return out_flat.reshape(n, c, h, w)                                  # free reshape


def init_dconv_params(key, in_dim):
    """Deterministic synthetic parameters for the 3 conv_relu_bn blocks."""
    dilations = [2, 4, 2]
    eps = 1e-5
    params = []
    for i, d in enumerate(dilations):
        kw_, kb_, kg_, kbeta_ = jax.random.split(jax.random.fold_in(key, i), 4)
        w = 0.1 * jax.random.normal(kw_, (3, 3, in_dim, in_dim), jnp.float32)
        conv_b = 0.1 * jax.random.normal(kb_, (in_dim,), jnp.float32)
        gamma = 1.0 + 0.1 * jax.random.normal(kg_, (in_dim,), jnp.float32)
        beta = 0.1 * jax.random.normal(kbeta_, (in_dim,), jnp.float32)
        run_mean = jnp.zeros((in_dim,), jnp.float32)   # BN running stats (eval mode)
        run_var = jnp.ones((in_dim,), jnp.float32)
        scale = gamma / jnp.sqrt(run_var + eps)
        shift = (conv_b - run_mean) * scale + beta
        params.append((w, scale, shift, d))
    return params


def _reference_forward(x_nhwc, params):
    """Pure-JAX reference (same eval-mode folded-BN math) for validation."""
    y = x_nhwc
    for w, s, t, d in params:
        y = jax.lax.conv_general_dilated(
            y, w, window_strides=(1, 1), padding=[(d, d), (d, d)],
            rhs_dilation=(d, d), dimension_numbers=("NHWC", "HWIO", "NHWC"))
        y = jnp.maximum(y * s + t, 0.0)
    return y


if __name__ == "__main__":
    key = jax.random.PRNGKey(0)
    in_dim = 4
    x = jax.random.normal(jax.random.fold_in(key, 99), (2, in_dim, 16, 16),
                          jnp.float32)

    params = init_dconv_params(key, in_dim)

    out = dconv_forward(x, params)
    out = jax.block_until_ready(out)

    ref = jnp.transpose(
        _reference_forward(jnp.transpose(x, (0, 2, 3, 1)), params), (0, 3, 1, 2))

    assert out.shape == (2, in_dim, 16, 16), out.shape
    assert jnp.allclose(out, ref, atol=1e-4, rtol=1e-4), "mismatch vs JAX reference"
    print("KERNEL_OK")
</pallas_src>

<mosaic_0001>
module attributes {stable_mosaic.version = 11 : i64} {
  func.func @_dconv_fused_kernel(%arg0: i32, %arg1: memref<1x4x256xf32, #tpu.memory_space<vmem>>, %arg2: memref<3x4x36xf32, #tpu.memory_space<vmem>>, %arg3: memref<3x4x1xf32, #tpu.memory_space<vmem>>, %arg4: memref<1x4x256xf32, #tpu.memory_space<vmem>>, %arg5: memref<4x512xf32, #tpu.memory_space<vmem>>, %arg6: memref<36x256xf32, #tpu.memory_space<vmem>>) attributes {dimension_semantics = [#tpu.dimension_semantics<parallel>], iteration_bounds = array<i64: 2>, scalar_prefetch = 0 : i64, scratch_operands = 2 : i64, tpu.core_type = #tpu.core_type<tc>, window_params = [{transform_indices = @transform_0, window_bounds = array<i64: 1, 4, 256>}, {pipeline_mode = #tpu.pipeline_mode<synchronous>, transform_indices = @transform_1, window_bounds = array<i64: 3, 4, 36>}, {pipeline_mode = #tpu.pipeline_mode<synchronous>, transform_indices = @transform_2, window_bounds = array<i64: 3, 4, 1>}, {transform_indices = @transform_3, window_bounds = array<i64: 1, 4, 256>}]} {
    %cst = arith.constant 0.000000e+00 : f32
    %0 = vector.broadcast %cst : f32 to vector<4x128xf32>
    %c0 = arith.constant 0 : index
    %c0_0 = arith.constant 0 : index
    %1 = vector.load %arg5[%c0, %c0_0] : memref<4x512xf32, #tpu.memory_space<vmem>>, vector<4x128xf32>
    tpu.vector_store %arg5[%c0, %c0_0], %0 {strides = array<i32>} : memref<4x512xf32, #tpu.memory_space<vmem>>, vector<4x128xf32>,
    %cst_1 = arith.constant 0.000000e+00 : f32
    %2 = vector.broadcast %cst_1 : f32 to vector<4x128xf32>
    %c0_2 = arith.constant 0 : index
    %c384 = arith.constant 384 : index
    %3 = vector.load %arg5[%c0_2, %c384] : memref<4x512xf32, #tpu.memory_space<vmem>>, vector<4x128xf32>
    tpu.vector_store %arg5[%c0_2, %c384], %2 {strides = array<i32>} : memref<4x512xf32, #tpu.memory_space<vmem>>, vector<4x128xf32>,
    %4 = tpu.iota {dimensions = array<i32: 1>} : vector<1x256xi32>
    %c16_i32 = arith.constant 16 : i32
    %c0_i32 = arith.constant 0 : i32
    %5 = arith.cmpi eq, %c16_i32, %c0_i32 : i32
    %c1_i32 = arith.constant 1 : i32
    %6 = arith.select %5, %c1_i32, %c16_i32 : i32
    %7 = vector.broadcast %6 : i32 to vector<1x256xi32>
    %8 = arith.remsi %4, %7 : vector<1x256xi32>
    %c0_i32_3 = arith.constant 0 : i32
    %9 = vector.broadcast %c0_i32_3 : i32 to vector<1x256xi32>
    %10 = arith.cmpi ne, %8, %9 : vector<1x256xi32>
    %c0_i32_4 = arith.constant 0 : i32
    %11 = vector.broadcast %c0_i32_4 : i32 to vector<1x256xi32>
    %12 = arith.cmpi slt, %8, %11 : vector<1x256xi32>
    %c0_i32_5 = arith.constant 0 : i32
    %13 = arith.cmpi slt, %6, %c0_i32_5 : i32
    %14 = vector.broadcast %13 : i1 to vector<1x256xi1>
    %15 = vector.broadcast %14 : vector<1x256xi1> to vector<1x256xi1>
    %16 = arith.xori %12, %15 : vector<1x256xi1>
    %17 = arith.andi %16, %10 : vector<1x256xi1>
    %18 = vector.broadcast %6 : i32 to vector<1x256xi32>
    %19 = arith.addi %8, %18 : vector<1x256xi32>
    %20 = arith.select %17, %19, %8 : vector<1x256xi1>, vector<1x256xi32>
    %c2_i32 = arith.constant 2 : i32
    %21 = vector.broadcast %c2_i32 : i32 to vector<1x256xi32>
    %22 = arith.cmpi sge, %20, %21 : vector<1x256xi32>
    %c14_i32 = arith.constant 14 : i32
    %23 = vector.broadcast %c14_i32 : i32 to vector<1x256xi32>
    %24 = arith.cmpi slt, %20, %23 : vector<1x256xi32>
    %c4_i32 = arith.constant 4 : i32
    %25 = vector.broadcast %c4_i32 : i32 to vector<1x256xi32>
    %26 = arith.cmpi sge, %20, %25 : vector<1x256xi32>
    %c12_i32 = arith.constant 12 : i32
    %27 = vector.broadcast %c12_i32 : i32 to vector<1x256xi32>
    %28 = arith.cmpi slt, %20, %27 : vector<1x256xi32>
    %c0_6 = arith.constant 0 : index
    %c0_7 = arith.constant 0 : index
    %c0_8 = arith.constant 0 : index
    %29 = vector.load %arg1[%c0_6, %c0_7, %c0_8] : memref<1x4x256xf32, #tpu.memory_space<vmem>>, vector<1x4x256xf32>
    %30 = vector.shape_cast %29 : vector<1x4x256xf32> to vector<4x256xf32>
    %c0_9 = arith.constant 0 : index
    %c128 = arith.constant 128 : index
    %31 = vector.load %arg5[%c0_9, %c128] : memref<4x512xf32, #tpu.memory_space<vmem>>, vector<4x256xf32>
    tpu.vector_store %arg5[%c0_9, %c128], %30 {strides = array<i32>} : memref<4x512xf32, #tpu.memory_space<vmem>>, vector<4x256xf32>,
    %c0_10 = arith.constant 0 : index
    %c94 = arith.constant 94 : index
    %32 = vector.load %arg5[%c0_10, %c94] : memref<4x512xf32, #tpu.memory_space<vmem>>, vector<4x256xf32>
    %cst_11 = arith.constant 0.000000e+00 : f32
    %33 = vector.shape_cast %22 : vector<1x256xi1> to vector<1x256xi1>
    %34 = vector.broadcast %33 : vector<1x256xi1> to vector<4x256xi1>
    %35 = vector.broadcast %cst_11 : f32 to vector<4x256xf32>
    %36 = arith.select %34, %32, %35 : vector<4x256xi1>, vector<4x256xf32>
    %c0_12 = arith.constant 0 : index
    %c0_13 = arith.constant 0 : index
    %37 = vector.load %arg6[%c0_12, %c0_13] : memref<36x256xf32, #tpu.memory_space<vmem>>, vector<4x256xf32>
    tpu.vector_store %arg6[%c0_12, %c0_13], %36 {strides = array<i32>} : memref<36x256xf32, #tpu.memory_space<vmem>>, vector<4x256xf32>,
    %c0_14 = arith.constant 0 : index
    %c96 = arith.constant 96 : index
    %38 = vector.load %arg5[%c0_14, %c96] : memref<4x512xf32, #tpu.memory_space<vmem>>, vector<4x256xf32>
    %c4 = arith.constant 4 : index
    %c0_15 = arith.constant 0 : index
    %39 = vector.load %arg6[%c4, %c0_15] : memref<36x256xf32, #tpu.memory_space<vmem>>, vector<4x256xf32>
    tpu.vector_store %arg6[%c4, %c0_15], %38 {strides = array<i32>} : memref<36x256xf32, #tpu.memory_space<vmem>>, vector<4x256xf32>,
    %c0_16 = arith.constant 0 : index
    %c98 = arith.constant 98 : index
    %40 = vector.load %arg5[%c0_16, %c98] : memref<4x512xf32, #tpu.memory_space<vmem>>, vector<4x256xf32>
    %cst_17 = arith.constant 0.000000e+00 : f32
    %41 = vector.shape_cast %24 : vector<1x256xi1> to vector<1x256xi1>
    %42 = vector.broadcast %41 : vector<1x256xi1> to vector<4x256xi1>
    %43 = vector.broadcast %cst_17 : f32 to vector<4x256xf32>
    %44 = arith.select %42, %40, %43 : vector<4x256xi1>, vector<4x256xf32>
    %c8 = arith.constant 8 : index
    %c0_18 = arith.constant 0 : index
    %45 = vector.load %arg6[%c8, %c0_18] : memref<36x256xf32, #tpu.memory_space<vmem>>, vector<4x256xf32>
    tpu.vector_store %arg6[%c8, %c0_18], %44 {strides = array<i32>} : memref<36x256xf32, #tpu.memory_space<vmem>>, vector<4x256xf32>,
    %c0_19 = arith.constant 0 : index
    %c126 = arith.constant 126 : index
    %46 = vector.load %arg5[%c0_19, %c126] : memref<4x512xf32, #tpu.memory_space<vmem>>, vector<4x256xf32>
    %cst_20 = arith.constant 0.000000e+00 : f32
    %47 = vector.shape_cast %22 : vector<1x256xi1> to vector<1x256xi1>
    %48 = vector.broadcast %47 : vector<1x256xi1> to vector<4x256xi1>
    %49 = vector.broadcast %cst_20 : f32 to vector<4x256xf32>
    %50 = arith.select %48, %46, %49 : vector<4x256xi1>, vector<4x256xf32>
    %c12 = arith.constant 12 : index
    %c0_21 = arith.constant 0 : index
    %51 = vector.load %arg6[%c12, %c0_21] : memref<36x256xf32, #tpu.memory_space<vmem>>, vector<4x256xf32>
    tpu.vector_store %arg6[%c12, %c0_21], %50 {strides = array<i32>} : memref<36x256xf32, #tpu.memory_space<vmem>>, vector<4x256xf32>,
    %c16 = arith.constant 16 : index
    %c0_22 = arith.constant 0 : index
    %52 = vector.load %arg6[%c16, %c0_22] : memref<36x256xf32, #tpu.memory_space<vmem>>, vector<4x256xf32>
    tpu.vector_store %arg6[%c16, %c0_22], %30 {strides = array<i32>} : memref<36x256xf32, #tpu.memory_space<vmem>>, vector<4x256xf32>,
    %c0_23 = arith.constant 0 : index
    %c130 = arith.constant 130 : index
    %53 = vector.load %arg5[%c0_23, %c130] : memref<4x512xf32, #tpu.memory_space<vmem>>, vector<4x256xf32>
    %cst_24 = arith.constant 0.000000e+00 : f32
    %54 = vector.shape_cast %24 : vector<1x256xi1> to vector<1x256xi1>
    %55 = vector.broadcast %54 : vector<1x256xi1> to vector<4x256xi1>
    %56 = vector.broadcast %cst_24 : f32 to vector<4x256xf32>
    %57 = arith.select %55, %53, %56 : vector<4x256xi1>, vector<4x256xf32>
    %c20 = arith.constant 20 : index
    %c0_25 = arith.constant 0 : index
    %58 = vector.load %arg6[%c20, %c0_25] : memref<36x256xf32, #tpu.memory_space<vmem>>, vector<4x256xf32>
    tpu.vector_store %arg6[%c20, %c0_25], %57 {strides = array<i32>} : memref<36x256xf32, #tpu.memory_space<vmem>>, vector<4x256xf32>,
    %c0_26 = arith.constant 0 : index
    %c158 = arith.constant 158 : index
    %59 = vector.load %arg5[%c0_26, %c158] : memref<4x512xf32, #tpu.memory_space<vmem>>, vector<4x256xf32>
    %cst_27 = arith.constant 0.000000e+00 : f32
    %60 = vector.shape_cast %22 : vector<1x256xi1> to vector<1x256xi1>
    %61 = vector.broadcast %60 : vector<1x256xi1> to vector<4x256xi1>
    %62 = vector.broadcast %cst_27 : f32 to vector<4x256xf32>
    %63 = arith.select %61, %59, %62 : vector<4x256xi1>, vector<4x256xf32>
    %c24 = arith.constant 24 : index
    %c0_28 = arith.constant 0 : index
    %64 = vector.load %arg6[%c24, %c0_28] : memref<36x256xf32, #tpu.memory_space<vmem>>, vector<4x256xf32>
    tpu.vector_store %arg6[%c24, %c0_28], %63 {strides = array<i32>} : memref<36x256xf32, #tpu.memory_space<vmem>>, vector<4x256xf32>,
    %c0_29 = arith.constant 0 : index
    %c160 = arith.constant 160 : index
    %65 = vector.load %arg5[%c0_29, %c160] : memref<4x512xf32, #tpu.memory_space<vmem>>, vector<4x256xf32>
    %c28 = arith.constant 28 : index
    %c0_30 = arith.constant 0 : index
    %66 = vector.load %arg6[%c28, %c0_30] : memref<36x256xf32, #tpu.memory_space<vmem>>, vector<4x256xf32>
    tpu.vector_store %arg6[%c28, %c0_30], %65 {strides = array<i32>} : memref<36x256xf32, #tpu.memory_space<vmem>>, vector<4x256xf32>,
    %c0_31 = arith.constant 0 : index
    %c162 = arith.constant 162 : index
    %67 = vector.load %arg5[%c0_31, %c162] : memref<4x512xf32, #tpu.memory_space<vmem>>, vector<4x256xf32>
    %cst_32 = arith.constant 0.000000e+00 : f32
    %68 = vector.shape_cast %24 : vector<1x256xi1> to vector<1x256xi1>
    %69 = vector.broadcast %68 : vector<1x256xi1> to vector<4x256xi1>
    %70 = vector.broadcast %cst_32 : f32 to vector<4x256xf32>
    %71 = arith.select %69, %67, %70 : vector<4x256xi1>, vector<4x256xf32>
    %c32 = arith.constant 32 : index
    %c0_33 = arith.constant 0 : index
    %72 = vector.load %arg6[%c32, %c0_33] : memref<36x256xf32, #tpu.memory_space<vmem>>, vector<4x256xf32>
    tpu.vector_store %arg6[%c32, %c0_33], %71 {strides = array<i32>} : memref<36x256xf32, #tpu.memory_space<vmem>>, vector<4x256xf32>,
    %c0_34 = arith.constant 0 : index
    %c0_35 = arith.constant 0 : index
    %c0_36 = arith.constant 0 : index
    %73 = vector.load %arg2[%c0_34, %c0_35, %c0_36] : memref<3x4x36xf32, #tpu.memory_space<vmem>>, vector<1x4x36xf32>
    %74 = vector.shape_cast %73 : vector<1x4x36xf32> to vector<4x36xf32>
    %c0_37 = arith.constant 0 : index
    %c0_38 = arith.constant 0 : index
    %75 = vector.load %arg6[%c0_37, %c0_38] : memref<36x256xf32, #tpu.memory_space<vmem>>, vector<36x256xf32>
    %cst_39 = arith.constant dense<0.000000e+00> : vector<4x256xf32>
    %76 = tpu.matmul %74, %75, %cst_39 {dimension_numbers = #tpu.dot_dimension_numbers<[1], [0], [0], [1], [0, 0, 1, 1], [], []>} : vector<4x36xf32>, vector<36x256xf32>, vector<4x256xf32> -> vector<4x256xf32>
    %c0_40 = arith.constant 0 : index
    %c0_41 = arith.constant 0 : index
    %c0_42 = arith.constant 0 : index
    %77 = vector.load %arg3[%c0_40, %c0_41, %c0_42] : memref<3x4x1xf32, #tpu.memory_space<vmem>>, vector<1x4x1xf32>
    %78 = vector.shape_cast %77 : vector<1x4x1xf32> to vector<4x1xf32>
    %79 = vector.broadcast %78 : vector<4x1xf32> to vector<4x256xf32>
    %80 = arith.addf %76, %79 : vector<4x256xf32>
    %cst_43 = arith.constant 0.000000e+00 : f32
    %81 = vector.broadcast %cst_43 : f32 to vector<4x256xf32>
    %82 = arith.maximumf %80, %81 : vector<4x256xf32>
    %c0_44 = arith.constant 0 : index
    %c128_45 = arith.constant 128 : index
    %83 = vector.load %arg5[%c0_44, %c128_45] : memref<4x512xf32, #tpu.memory_space<vmem>>, vector<4x256xf32>
    tpu.vector_store %arg5[%c0_44, %c128_45], %82 {strides = array<i32>} : memref<4x512xf32, #tpu.memory_space<vmem>>, vector<4x256xf32>,
    %c0_46 = arith.constant 0 : index
    %c60 = arith.constant 60 : index
    %84 = vector.load %arg5[%c0_46, %c60] : memref<4x512xf32, #tpu.memory_space<vmem>>, vector<4x256xf32>
    %cst_47 = arith.constant 0.000000e+00 : f32
    %85 = vector.shape_cast %26 : vector<1x256xi1> to vector<1x256xi1>
    %86 = vector.broadcast %85 : vector<1x256xi1> to vector<4x256xi1>
    %87 = vector.broadcast %cst_47 : f32 to vector<4x256xf32>
    %88 = arith.select %86, %84, %87 : vector<4x256xi1>, vector<4x256xf32>
    %c0_48 = arith.constant 0 : index
    %c0_49 = arith.constant 0 : index
    %89 = vector.load %arg6[%c0_48, %c0_49] : memref<36x256xf32, #tpu.memory_space<vmem>>, vector<4x256xf32>
    tpu.vector_store %arg6[%c0_48, %c0_49], %88 {strides = array<i32>} : memref<36x256xf32, #tpu.memory_space<vmem>>, vector<4x256xf32>,
    %c0_50 = arith.constant 0 : index
    %c64 = arith.constant 64 : index
    %90 = vector.load %arg5[%c0_50, %c64] : memref<4x512xf32, #tpu.memory_space<vmem>>, vector<4x256xf32>
    %c4_51 = arith.constant 4 : index
    %c0_52 = arith.constant 0 : index
    %91 = vector.load %arg6[%c4_51, %c0_52] : memref<36x256xf32, #tpu.memory_space<vmem>>, vector<4x256xf32>
    tpu.vector_store %arg6[%c4_51, %c0_52], %90 {strides = array<i32>} : memref<36x256xf32, #tpu.memory_space<vmem>>, vector<4x256xf32>,
    %c0_53 = arith.constant 0 : index
    %c68 = arith.constant 68 : index
    %92 = vector.load %arg5[%c0_53, %c68] : memref<4x512xf32, #tpu.memory_space<vmem>>, vector<4x256xf32>
    %cst_54 = arith.constant 0.000000e+00 : f32
    %93 = vector.shape_cast %28 : vector<1x256xi1> to vector<1x256xi1>
    %94 = vector.broadcast %93 : vector<1x256xi1> to vector<4x256xi1>
    %95 = vector.broadcast %cst_54 : f32 to vector<4x256xf32>
    %96 = arith.select %94, %92, %95 : vector<4x256xi1>, vector<4x256xf32>
    %c8_55 = arith.constant 8 : index
    %c0_56 = arith.constant 0 : index
    %97 = vector.load %arg6[%c8_55, %c0_56] : memref<36x256xf32, #tpu.memory_space<vmem>>, vector<4x256xf32>
    tpu.vector_store %arg6[%c8_55, %c0_56], %96 {strides = array<i32>} : memref<36x256xf32, #tpu.memory_space<vmem>>, vector<4x256xf32>,
    %c0_57 = arith.constant 0 : index
    %c124 = arith.constant 124 : index
    %98 = vector.load %arg5[%c0_57, %c124] : memref<4x512xf32, #tpu.memory_space<vmem>>, vector<4x256xf32>
    %cst_58 = arith.constant 0.000000e+00 : f32
    %99 = vector.shape_cast %26 : vector<1x256xi1> to vector<1x256xi1>
    %100 = vector.broadcast %99 : vector<1x256xi1> to vector<4x256xi1>
    %101 = vector.broadcast %cst_58 : f32 to vector<4x256xf32>
    %102 = arith.select %100, %98, %101 : vector<4x256xi1>, vector<4x256xf32>
    %c12_59 = arith.constant 12 : index
    %c0_60 = arith.constant 0 : index
    %103 = vector.load %arg6[%c12_59, %c0_60] : memref<36x256xf32, #tpu.memory_space<vmem>>, vector<4x256xf32>
    tpu.vector_store %arg6[%c12_59, %c0_60], %102 {strides = array<i32>} : memref<36x256xf32, #tpu.memory_space<vmem>>, vector<4x256xf32>,
    %c16_61 = arith.constant 16 : index
    %c0_62 = arith.constant 0 : index
    %104 = vector.load %arg6[%c16_61, %c0_62] : memref<36x256xf32, #tpu.memory_space<vmem>>, vector<4x256xf32>
    tpu.vector_store %arg6[%c16_61, %c0_62], %82 {strides = array<i32>} : memref<36x256xf32, #tpu.memory_space<vmem>>, vector<4x256xf32>,
    %c0_63 = arith.constant 0 : index
    %c132 = arith.constant 132 : index
    %105 = vector.load %arg5[%c0_63, %c132] : memref<4x512xf32, #tpu.memory_space<vmem>>, vector<4x256xf32>
    %cst_64 = arith.constant 0.000000e+00 : f32
    %106 = vector.shape_cast %28 : vector<1x256xi1> to vector<1x256xi1>
    %107 = vector.broadcast %106 : vector<1x256xi1> to vector<4x256xi1>
    %108 = vector.broadcast %cst_64 : f32 to vector<4x256xf32>
    %109 = arith.select %107, %105, %108 : vector<4x256xi1>, vector<4x256xf32>
    %c20_65 = arith.constant 20 : index
    %c0_66 = arith.constant 0 : index
    %110 = vector.load %arg6[%c20_65, %c0_66] : memref<36x256xf32, #tpu.memory_space<vmem>>, vector<4x256xf32>
    tpu.vector_store %arg6[%c20_65, %c0_66], %109 {strides = array<i32>} : memref<36x256xf32, #tpu.memory_space<vmem>>, vector<4x256xf32>,
    %c0_67 = arith.constant 0 : index
    %c188 = arith.constant 188 : index
    %111 = vector.load %arg5[%c0_67, %c188] : memref<4x512xf32, #tpu.memory_space<vmem>>, vector<4x256xf32>
    %cst_68 = arith.constant 0.000000e+00 : f32
    %112 = vector.shape_cast %26 : vector<1x256xi1> to vector<1x256xi1>
    %113 = vector.broadcast %112 : vector<1x256xi1> to vector<4x256xi1>
    %114 = vector.broadcast %cst_68 : f32 to vector<4x256xf32>
    %115 = arith.select %113, %111, %114 : vector<4x256xi1>, vector<4x256xf32>
    %c24_69 = arith.constant 24 : index
    %c0_70 = arith.constant 0 : index
    %116 = vector.load %arg6[%c24_69, %c0_70] : memref<36x256xf32, #tpu.memory_space<vmem>>, vector<4x256xf32>
    tpu.vector_store %arg6[%c24_69, %c0_70], %115 {strides = array<i32>} : memref<36x256xf32, #tpu.memory_space<vmem>>, vector<4x256xf32>,
    %c0_71 = arith.constant 0 : index
    %c192 = arith.constant 192 : index
    %117 = vector.load %arg5[%c0_71, %c192] : memref<4x512xf32, #tpu.memory_space<vmem>>, vector<4x256xf32>
    %c28_72 = arith.constant 28 : index
    %c0_73 = arith.constant 0 : index
    %118 = vector.load %arg6[%c28_72, %c0_73] : memref<36x256xf32, #tpu.memory_space<vmem>>, vector<4x256xf32>
    tpu.vector_store %arg6[%c28_72, %c0_73], %117 {strides = array<i32>} : memref<36x256xf32, #tpu.memory_space<vmem>>, vector<4x256xf32>,
    %c0_74 = arith.constant 0 : index
    %c196 = arith.constant 196 : index
    %119 = vector.load %arg5[%c0_74, %c196] : memref<4x512xf32, #tpu.memory_space<vmem>>, vector<4x256xf32>
    %cst_75 = arith.constant 0.000000e+00 : f32
    %120 = vector.shape_cast %28 : vector<1x256xi1> to vector<1x256xi1>
    %121 = vector.broadcast %120 : vector<1x256xi1> to vector<4x256xi1>
    %122 = vector.broadcast %cst_75 : f32 to vector<4x256xf32>
    %123 = arith.select %121, %119, %122 : vector<4x256xi1>, vector<4x256xf32>
    %c32_76 = arith.constant 32 : index
    %c0_77 = arith.constant 0 : index
    %124 = vector.load %arg6[%c32_76, %c0_77] : memref<36x256xf32, #tpu.memory_space<vmem>>, vector<4x256xf32>
    tpu.vector_store %arg6[%c32_76, %c0_77], %123 {strides = array<i32>} : memref<36x256xf32, #tpu.memory_space<vmem>>, vector<4x256xf32>,
    %c1 = arith.constant 1 : index
    %c0_78 = arith.constant 0 : index
    %c0_79 = arith.constant 0 : index
    %125 = vector.load %arg2[%c1, %c0_78, %c0_79] : memref<3x4x36xf32, #tpu.memory_space<vmem>>, vector<1x4x36xf32>
    %126 = vector.shape_cast %125 : vector<1x4x36xf32> to vector<4x36xf32>
    %c0_80 = arith.constant 0 : index
    %c0_81 = arith.constant 0 : index
    %127 = vector.load %arg6[%c0_80, %c0_81] : memref<36x256xf32, #tpu.memory_space<vmem>>, vector<36x256xf32>
    %cst_82 = arith.constant dense<0.000000e+00> : vector<4x256xf32>
    %128 = tpu.matmul %126, %127, %cst_82 {dimension_numbers = #tpu.dot_dimension_numbers<[1], [0], [0], [1], [0, 0, 1, 1], [], []>} : vector<4x36xf32>, vector<36x256xf32>, vector<4x256xf32> -> vector<4x256xf32>
    %c1_83 = arith.constant 1 : index
    %c0_84 = arith.constant 0 : index
    %c0_85 = arith.constant 0 : index
    %129 = vector.load %arg3[%c1_83, %c0_84, %c0_85] : memref<3x4x1xf32, #tpu.memory_space<vmem>>, vector<1x4x1xf32>
    %130 = vector.shape_cast %129 : vector<1x4x1xf32> to vector<4x1xf32>
    %131 = vector.broadcast %130 : vector<4x1xf32> to vector<4x256xf32>
    %132 = arith.addf %128, %131 : vector<4x256xf32>
    %cst_86 = arith.constant 0.000000e+00 : f32
    %133 = vector.broadcast %cst_86 : f32 to vector<4x256xf32>
    %134 = arith.maximumf %132, %133 : vector<4x256xf32>
    %c0_87 = arith.constant 0 : index
    %c128_88 = arith.constant 128 : index
    %135 = vector.load %arg5[%c0_87, %c128_88] : memref<4x512xf32, #tpu.memory_space<vmem>>, vector<4x256xf32>
    tpu.vector_store %arg5[%c0_87, %c128_88], %134 {strides = array<i32>} : memref<4x512xf32, #tpu.memory_space<vmem>>, vector<4x256xf32>,
    %c0_89 = arith.constant 0 : index
    %c94_90 = arith.constant 94 : index
    %136 = vector.load %arg5[%c0_89, %c94_90] : memref<4x512xf32, #tpu.memory_space<vmem>>, vector<4x256xf32>
    %cst_91 = arith.constant 0.000000e+00 : f32
    %137 = vector.shape_cast %22 : vector<1x256xi1> to vector<1x256xi1>
    %138 = vector.broadcast %137 : vector<1x256xi1> to vector<4x256xi1>
    %139 = vector.broadcast %cst_91 : f32 to vector<4x256xf32>
    %140 = arith.select %138, %136, %139 : vector<4x256xi1>, vector<4x256xf32>
    %c0_92 = arith.constant 0 : index
    %c0_93 = arith.constant 0 : index
    %141 = vector.load %arg6[%c0_92, %c0_93] : memref<36x256xf32, #tpu.memory_space<vmem>>, vector<4x256xf32>
    tpu.vector_store %arg6[%c0_92, %c0_93], %140 {strides = array<i32>} : memref<36x256xf32, #tpu.memory_space<vmem>>, vector<4x256xf32>,
    %c0_94 = arith.constant 0 : index
    %c96_95 = arith.constant 96 : index
    %142 = vector.load %arg5[%c0_94, %c96_95] : memref<4x512xf32, #tpu.memory_space<vmem>>, vector<4x256xf32>
    %c4_96 = arith.constant 4 : index
    %c0_97 = arith.constant 0 : index
    %143 = vector.load %arg6[%c4_96, %c0_97] : memref<36x256xf32, #tpu.memory_space<vmem>>, vector<4x256xf32>
    tpu.vector_store %arg6[%c4_96, %c0_97], %142 {strides = array<i32>} : memref<36x256xf32, #tpu.memory_space<vmem>>, vector<4x256xf32>,
    %c0_98 = arith.constant 0 : index
    %c98_99 = arith.constant 98 : index
    %144 = vector.load %arg5[%c0_98, %c98_99] : memref<4x512xf32, #tpu.memory_space<vmem>>, vector<4x256xf32>
    %cst_100 = arith.constant 0.000000e+00 : f32
    %145 = vector.shape_cast %24 : vector<1x256xi1> to vector<1x256xi1>
    %146 = vector.broadcast %145 : vector<1x256xi1> to vector<4x256xi1>
    %147 = vector.broadcast %cst_100 : f32 to vector<4x256xf32>
    %148 = arith.select %146, %144, %147 : vector<4x256xi1>, vector<4x256xf32>
    %c8_101 = arith.constant 8 : index
    %c0_102 = arith.constant 0 : index
    %149 = vector.load %arg6[%c8_101, %c0_102] : memref<36x256xf32, #tpu.memory_space<vmem>>, vector<4x256xf32>
    tpu.vector_store %arg6[%c8_101, %c0_102], %148 {strides = array<i32>} : memref<36x256xf32, #tpu.memory_space<vmem>>, vector<4x256xf32>,
    %c0_103 = arith.constant 0 : index
    %c126_104 = arith.constant 126 : index
    %150 = vector.load %arg5[%c0_103, %c126_104] : memref<4x512xf32, #tpu.memory_space<vmem>>, vector<4x256xf32>
    %cst_105 = arith.constant 0.000000e+00 : f32
    %151 = vector.shape_cast %22 : vector<1x256xi1> to vector<1x256xi1>
    %152 = vector.broadcast %151 : vector<1x256xi1> to vector<4x256xi1>
    %153 = vector.broadcast %cst_105 : f32 to vector<4x256xf32>
    %154 = arith.select %152, %150, %153 : vector<4x256xi1>, vector<4x256xf32>
    %c12_106 = arith.constant 12 : index
    %c0_107 = arith.constant 0 : index
    %155 = vector.load %arg6[%c12_106, %c0_107] : memref<36x256xf32, #tpu.memory_space<vmem>>, vector<4x256xf32>
    tpu.vector_store %arg6[%c12_106, %c0_107], %154 {strides = array<i32>} : memref<36x256xf32, #tpu.memory_space<vmem>>, vector<4x256xf32>,
    %c16_108 = arith.constant 16 : index
    %c0_109 = arith.constant 0 : index
    %156 = vector.load %arg6[%c16_108, %c0_109] : memref<36x256xf32, #tpu.memory_space<vmem>>, vector<4x256xf32>
    tpu.vector_store %arg6[%c16_108, %c0_109], %134 {strides = array<i32>} : memref<36x256xf32, #tpu.memory_space<vmem>>, vector<4x256xf32>,
    %c0_110 = arith.constant 0 : index
    %c130_111 = arith.constant 130 : index
    %157 = vector.load %arg5[%c0_110, %c130_111] : memref<4x512xf32, #tpu.memory_space<vmem>>, vector<4x256xf32>
    %cst_112 = arith.constant 0.000000e+00 : f32
    %158 = vector.shape_cast %24 : vector<1x256xi1> to vector<1x256xi1>
    %159 = vector.broadcast %158 : vector<1x256xi1> to vector<4x256xi1>
    %160 = vector.broadcast %cst_112 : f32 to vector<4x256xf32>
    %161 = arith.select %159, %157, %160 : vector<4x256xi1>, vector<4x256xf32>
    %c20_113 = arith.constant 20 : index
    %c0_114 = arith.constant 0 : index
    %162 = vector.load %arg6[%c20_113, %c0_114] : memref<36x256xf32, #tpu.memory_space<vmem>>, vector<4x256xf32>
    tpu.vector_store %arg6[%c20_113, %c0_114], %161 {strides = array<i32>} : memref<36x256xf32, #tpu.memory_space<vmem>>, vector<4x256xf32>,
    %c0_115 = arith.constant 0 : index
    %c158_116 = arith.constant 158 : index
    %163 = vector.load %arg5[%c0_115, %c158_116] : memref<4x512xf32, #tpu.memory_space<vmem>>, vector<4x256xf32>
    %cst_117 = arith.constant 0.000000e+00 : f32
    %164 = vector.shape_cast %22 : vector<1x256xi1> to vector<1x256xi1>
    %165 = vector.broadcast %164 : vector<1x256xi1> to vector<4x256xi1>
    %166 = vector.broadcast %cst_117 : f32 to vector<4x256xf32>
    %167 = arith.select %165, %163, %166 : vector<4x256xi1>, vector<4x256xf32>
    %c24_118 = arith.constant 24 : index
    %c0_119 = arith.constant 0 : index
    %168 = vector.load %arg6[%c24_118, %c0_119] : memref<36x256xf32, #tpu.memory_space<vmem>>, vector<4x256xf32>
    tpu.vector_store %arg6[%c24_118, %c0_119], %167 {strides = array<i32>} : memref<36x256xf32, #tpu.memory_space<vmem>>, vector<4x256xf32>,
    %c0_120 = arith.constant 0 : index
    %c160_121 = arith.constant 160 : index
    %169 = vector.load %arg5[%c0_120, %c160_121] : memref<4x512xf32, #tpu.memory_space<vmem>>, vector<4x256xf32>
    %c28_122 = arith.constant 28 : index
    %c0_123 = arith.constant 0 : index
    %170 = vector.load %arg6[%c28_122, %c0_123] : memref<36x256xf32, #tpu.memory_space<vmem>>, vector<4x256xf32>
    tpu.vector_store %arg6[%c28_122, %c0_123], %169 {strides = array<i32>} : memref<36x256xf32, #tpu.memory_space<vmem>>, vector<4x256xf32>,
    %c0_124 = arith.constant 0 : index
    %c162_125 = arith.constant 162 : index
    %171 = vector.load %arg5[%c0_124, %c162_125] : memref<4x512xf32, #tpu.memory_space<vmem>>, vector<4x256xf32>
    %cst_126 = arith.constant 0.000000e+00 : f32
    %172 = vector.shape_cast %24 : vector<1x256xi1> to vector<1x256xi1>
    %173 = vector.broadcast %172 : vector<1x256xi1> to vector<4x256xi1>
    %174 = vector.broadcast %cst_126 : f32 to vector<4x256xf32>
    %175 = arith.select %173, %171, %174 : vector<4x256xi1>, vector<4x256xf32>
    %c32_127 = arith.constant 32 : index
    %c0_128 = arith.constant 0 : index
    %176 = vector.load %arg6[%c32_127, %c0_128] : memref<36x256xf32, #tpu.memory_space<vmem>>, vector<4x256xf32>
    tpu.vector_store %arg6[%c32_127, %c0_128], %175 {strides = array<i32>} : memref<36x256xf32, #tpu.memory_space<vmem>>, vector<4x256xf32>,
    %c2 = arith.constant 2 : index
    %c0_129 = arith.constant 0 : index
    %c0_130 = arith.constant 0 : index
    %177 = vector.load %arg2[%c2, %c0_129, %c0_130] : memref<3x4x36xf32, #tpu.memory_space<vmem>>, vector<1x4x36xf32>
    %178 = vector.shape_cast %177 : vector<1x4x36xf32> to vector<4x36xf32>
    %c0_131 = arith.constant 0 : index
    %c0_132 = arith.constant 0 : index
    %179 = vector.load %arg6[%c0_131, %c0_132] : memref<36x256xf32, #tpu.memory_space<vmem>>, vector<36x256xf32>
    %cst_133 = arith.constant dense<0.000000e+00> : vector<4x256xf32>
    %180 = tpu.matmul %178, %179, %cst_133 {dimension_numbers = #tpu.dot_dimension_numbers<[1], [0], [0], [1], [0, 0, 1, 1], [], []>} : vector<4x36xf32>, vector<36x256xf32>, vector<4x256xf32> -> vector<4x256xf32>
    %c2_134 = arith.constant 2 : index
    %c0_135 = arith.constant 0 : index
    %c0_136 = arith.constant 0 : index
    %181 = vector.load %arg3[%c2_134, %c0_135, %c0_136] : memref<3x4x1xf32, #tpu.memory_space<vmem>>, vector<1x4x1xf32>
    %182 = vector.shape_cast %181 : vector<1x4x1xf32> to vector<4x1xf32>
    %183 = vector.broadcast %182 : vector<4x1xf32> to vector<4x256xf32>
    %184 = arith.addf %180, %183 : vector<4x256xf32>
    %cst_137 = arith.constant 0.000000e+00 : f32
    %185 = vector.broadcast %cst_137 : f32 to vector<4x256xf32>
    %186 = arith.maximumf %184, %185 : vector<4x256xf32>
    %c0_138 = arith.constant 0 : index
    %c0_139 = arith.constant 0 : index
    %c0_140 = arith.constant 0 : index
    %187 = vector.load %arg4[%c0_138, %c0_139, %c0_140] : memref<1x4x256xf32, #tpu.memory_space<vmem>>, vector<1x4x256xf32>
    %188 = vector.shape_cast %187 : vector<1x4x256xf32> to vector<4x256xf32>
    %189 = vector.shape_cast %186 : vector<4x256xf32> to vector<1x4x256xf32>
    tpu.vector_store %arg4[%c0_138, %c0_139, %c0_140], %189 {strides = array<i32>} : memref<1x4x256xf32, #tpu.memory_space<vmem>>, vector<1x4x256xf32>,
    return
  }
  func.func @transform_0(%arg0: i32) -> (i32, i32, i32) {
    %c0_i32 = arith.constant 0 : i32
    %c0_i32_0 = arith.constant 0 : i32
    %c0_i32_1 = arith.constant 0 : i32
    return %arg0, %c0_i32, %c0_i32_0 : i32, i32, i32
  }
  func.func @transform_1(%arg0: i32) -> (i32, i32, i32) {
    %c0_i32 = arith.constant 0 : i32
    %c0_i32_0 = arith.constant 0 : i32
    %c0_i32_1 = arith.constant 0 : i32
    %c0_i32_2 = arith.constant 0 : i32
    return %c0_i32, %c0_i32_0, %c0_i32_1 : i32, i32, i32
  }
  func.func @transform_2(%arg0: i32) -> (i32, i32, i32) {
    %c0_i32 = arith.constant 0 : i32
    %c0_i32_0 = arith.constant 0 : i32
    %c0_i32_1 = arith.constant 0 : i32
    %c0_i32_2 = arith.constant 0 : i32
    return %c0_i32, %c0_i32_0, %c0_i32_1 : i32, i32, i32
  }
  func.func @transform_3(%arg0: i32) -> (i32, i32, i32) {
    %c0_i32 = arith.constant 0 : i32
    %c0_i32_0 = arith.constant 0 : i32
    %c0_i32_1 = arith.constant 0 : i32
    return %arg0, %c0_i32, %c0_i32_0 : i32, i32, i32
  }
}

</mosaic_0001>

<llo_original>
// kernel: tpu_custom_call.1
$region0: #{tpu_custom_call.1}
  #allocation0 [shape = 'u32[]', space=smem, size = 0x4, offset = 0x4, fixed_abs, tag = 'smem constant byte address 0x4 - core index']
  #allocation1 [shape = 'u32[144,128]{1,0:T(1,128)}', space=vmem, size = 0x12000, scoped, tag = 'internal scratch']
  #allocation2 [shape = 'f32[4,512]{1,0:T(4,128)}', space=vmem, size = 0x2000, scoped, tag = 'scratch operand']
  #allocation3 [shape = 'f32[36,256]{1,0:T(8,128)}', space=vmem, size = 0xa000, scoped, tag = 'scratch operand']
  %s0 = inlined_call_operand.hbm [shape: f32[2,4,256], index: 0, kind: input, shape index: {}]
  %s1 = inlined_call_operand.vmem [shape: f32[3,4,36], index: 1, kind: input, shape index: {}]
  %s2 = inlined_call_operand.vmem [shape: f32[3,4,1], index: 2, kind: input, shape index: {}]
  %s3 = inlined_call_operand.hbm [shape: f32[2,4,256], index: 3, kind: output, shape index: {}]
  %s4 = sld [smem:[#allocation0]]
  $region49: #{tpu_custom_call.1} parent=0
    _
  %s6 = ssub.s32 1, %s4
  %s7 = scalar_select 0, %s6, %s4
  $region1: #{tpu_custom_call.1} parent=0
    #allocation4 [shape = 'u8[8192]{0}', space=vmem, size = 0x2000, scoped, tag = 'input window, operand 0']
    #allocation5 [shape = 's32[2]{0}', space=sflag, size = 0x8, scoped, tag = 'scoped memory for tpu_custom_call.1']
    #allocation6 [shape = 's32[2]{0}', space=sflag, size = 0x8, scoped, tag = 'scoped memory for tpu_custom_call.1']
    #allocation7 [shape = 'u8[8192]{0}', space=vmem, size = 0x2000, scoped, tag = 'output window, operand 0']
    %8 = vsyncpa [#allocation5], 0
    %s9 = scalar_lea.sflag [#allocation5], 1
    %10 = vsyncpa %s9, 0
    %11 = vsyncpa [#allocation6], 0
    %s12 = scalar_lea.sflag [#allocation6], 1
    %13 = vsyncpa %s12, 0
    loop: start=0, step=1, limit=4
    $region2: #{tpu_custom_call.1} parent=1 // loop_pre_header
      _
    $region3: #{tpu_custom_call.1} parent=1 // loop_header
      %s15 = sphi 0, %s19
      %p16 = scmp.ge.s32.totalorder %s15, 4
      %s25 = sphi 0, %s27
      %s28 = sphi 0, %s25
      %s29 = sphi 0, %s28
      %s45 = sphi 0, %s29
      %s49 = sphi 0, %s49
      %s51 = sphi 0, %s49
      %s52 = sphi 0, %s51
      %s66 = sphi 0, %s52
      %s70 = sphi 0, %s70
      %s72 = sphi 0, %s70
      %s73 = sphi 0, %s72
      %s87 = sphi 0, %s73
      %s93 = sphi 0, %s95
      %s96 = sphi 0, %s93
      %s97 = sphi 0, %s96
      %s113 = sphi 0, %s97
    $region4: #{tpu_custom_call.1} parent=1 // loop_header_branch
      %18 = sbr.rel (%p16) target = $region8
    $region5: #{tpu_custom_call.1} parent=1 // loop_body
      %s20 = ssub.s32 %s15, 1
      %s21 = ssub.s32 %s15, 2
      %s22 = sadd.s32 %s15, 1
      %s23 = ssub.s32 %s15, %s22
      %p24 = scmp.eq.s32.totalorder %s23, 0
      %s26 = sadd.s32 %s25, 1
      %s27 = scalar_select %p24, %s25, %s26
      %p30 = pneg %p24
      %p31 = scmp.eq.s32.totalorder %s15, 1
      %p32 = por %p30, %p31
      %p33 = scmp.ne.s32.totalorder %s25, %s28
      %p34 = scmp.eq.s32.totalorder %s15, 0
      %p35 = por %p33, %p34
      %p36 = scmp.ne.s32.totalorder %s25, %s28
      %p37 = scmp.eq.s32.totalorder %s20, 1
      %p38 = por %p36, %p37
      %p39 = scmp.ne.s32.totalorder %s28, %s29
      %p40 = scmp.eq.s32.totalorder %s20, 0
      %p41 = por %p39, %p40
      %p42 = scmp.ne.s32.totalorder %s28, %s29
      %p43 = scmp.eq.s32.totalorder %s21, 1
      %p44 = por %p42, %p43
      %p46 = scmp.ne.s32.totalorder %s29, %s45
      %p47 = scmp.eq.s32.totalorder %s21, 0
      %p48 = por %p46, %p47
      %s50 = sadd.s32 %s49, 1
      %p53 = scmp.eq.s32.totalorder %s15, 1
      %p54 = scmp.ne.s32.totalorder %s49, %s51
      %p55 = scmp.eq.s32.totalorder %s15, 0
      %p56 = por %p54, %p55
      %p57 = scmp.ne.s32.totalorder %s49, %s51
      %p58 = scmp.eq.s32.totalorder %s20, 1
      %p59 = por %p57, %p58
      %p60 = scmp.ne.s32.totalorder %s51, %s52
      %p61 = scmp.eq.s32.totalorder %s20, 0
      %p62 = por %p60, %p61
      %p63 = scmp.ne.s32.totalorder %s51, %s52
      %p64 = scmp.eq.s32.totalorder %s21, 1
      %p65 = por %p63, %p64
      %p67 = scmp.ne.s32.totalorder %s52, %s66
      %p68 = scmp.eq.s32.totalorder %s21, 0
      %p69 = por %p67, %p68
      %s71 = sadd.s32 %s70, 1
      %p74 = scmp.eq.s32.totalorder %s15, 1
      %p75 = scmp.ne.s32.totalorder %s70, %s72
      %p76 = scmp.eq.s32.totalorder %s15, 0
      %p77 = por %p75, %p76
      %p78 = scmp.ne.s32.totalorder %s70, %s72
      %p79 = scmp.eq.s32.totalorder %s20, 1
      %p80 = por %p78, %p79
      %p81 = scmp.ne.s32.totalorder %s72, %s73
      %p82 = scmp.eq.s32.totalorder %s20, 0
      %p83 = por %p81, %p82
      %p84 = scmp.ne.s32.totalorder %s72, %s73
      %p85 = scmp.eq.s32.totalorder %s21, 1
      %p86 = por %p84, %p85
      %p88 = scmp.ne.s32.totalorder %s73, %s87
      %p89 = scmp.eq.s32.totalorder %s21, 0
      %p90 = por %p88, %p89
      %s91 = ssub.s32 %s15, %s22
      %p92 = scmp.eq.s32.totalorder %s91, 0
      %s94 = sadd.s32 %s93, 1
      %s95 = scalar_select %p92, %s93, %s94
      %p98 = pneg %p92
      %p99 = scmp.eq.s32.totalorder %s15, 1
      %p100 = por %p98, %p99
      %p101 = scmp.ne.s32.totalorder %s93, %s96
      %p102 = scmp.eq.s32.totalorder %s15, 0
      %p103 = por %p101, %p102
      %p104 = scmp.ne.s32.totalorder %s93, %s96
      %p105 = scmp.eq.s32.totalorder %s20, 1
      %p106 = por %p104, %p105
      %p107 = scmp.ne.s32.totalorder %s96, %s97
      %p108 = scmp.eq.s32.totalorder %s20, 0
      %p109 = por %p107, %p108
      %p110 = scmp.ne.s32.totalorder %s96, %s97
      %p111 = scmp.eq.s32.totalorder %s21, 1
      %p112 = por %p110, %p111
      %p114 = scmp.ne.s32.totalorder %s97, %s113
      %p115 = scmp.eq.s32.totalorder %s21, 0
      %p116 = por %p114, %p115
      %p117 = scmp.le.s32.totalorder 1, %s15
      %p118 = scmp.lt.s32.totalorder %s15, 3
      %p119 = pnand %p117, %p118
      %p120 = pneg %p119
      // Predicated region
      $region9: #{tpu_custom_call.1} parent=5 // pred_check
        _
      $region10: #{tpu_custom_call.1} parent=5 // pred_check_branch
        %122 = sbr.rel (%p119) target = $region12
      $region11: #{tpu_custom_call.1} parent=5 // pred_region
        %s123 = ssub.s32 %s15, 1
        // Predicated region
        $region13: #{tpu_custom_call.1} parent=11 // pred_check
          %p124 = pneg %p62
        $region14: #{tpu_custom_call.1} parent=11 // pred_check_branch
          %126 = sbr.rel (%p124) target = $region16
        $region15: #{tpu_custom_call.1} parent=11 // pred_region
          _
        $region16: #{tpu_custom_call.1} parent=11 // pred_fallthru
          _
        // Predicated region
        $region17: #{tpu_custom_call.1} parent=11 // pred_check
          %p127 = pneg %p83
        $region18: #{tpu_custom_call.1} parent=11 // pred_check_branch
          %129 = sbr.rel (%p127) target = $region20
        $region19: #{tpu_custom_call.1} parent=11 // pred_region
          _
        $region20: #{tpu_custom_call.1} parent=11 // pred_fallthru
          _
      $region12: #{tpu_custom_call.1} parent=5 // pred_fallthru
        _
      %p130 = scmp.lt.s32.totalorder %s15, 2
      // Predicated region
      $region21: #{tpu_custom_call.1} parent=5 // pred_check
        %p131 = pneg %p130
      $region22: #{tpu_custom_call.1} parent=5 // pred_check_branch
        %133 = sbr.rel (%p131) target = $region24
      $region23: #{tpu_custom_call.1} parent=5 // pred_region
        // Predicated region
        $region25: #{tpu_custom_call.1} parent=23 // pred_check
          %p134 = pneg %p35
        $region26: #{tpu_custom_call.1} parent=23 // pred_check_branch
          %136 = sbr.rel (%p134) target = $region28
        $region27: #{tpu_custom_call.1} parent=23 // pred_region
          %s137 = sand.u32 %s25, 1
          %s138 = scalar_lea.sflag [#allocation5], %s137
          %s139 = sand.u32 %s25, 1
          %s140 = smul.addr %s139, 8
          %s141 = scalar_lea.vmem [#allocation4], %s140
          %s143 = ssub.s32 128, 128
          %144 = vsyncadd %s138, %s143
          %s145 = smul.addr %s15, 2
          %s146 = smul.addr %s145, 64
          %s147 = scalar_lea.hbm %s0, %s146
          %s149 = sshll.u32 %s141, 4
          %s150 = int_to_ptr.vmem [resolvable:$true] %s149
          %152 = dma.hbm_to_vmem [thread:$0]  %s147, 128, %s150, %s138
        $region28: #{tpu_custom_call.1} parent=23 // pred_fallthru
          _
      $region24: #{tpu_custom_call.1} parent=5 // pred_fallthru
        _
      %p153 = scmp.le.s32.totalorder 1, %s15
      %p154 = scmp.lt.s32.totalorder %s15, 3
      %p155 = pnand %p153, %p154
      %p156 = pneg %p155
      // Predicated region
      $region29: #{tpu_custom_call.1} parent=5 // pred_check
        _
      $region30: #{tpu_custom_call.1} parent=5 // pred_check_branch
        %158 = sbr.rel (%p155) target = $region32
      $region31: #{tpu_custom_call.1} parent=5 // pred_region
        %s159 = ssub.s32 %s15, 1
        %s160 = sand.u32 %s28, 1
        %s161 = scalar_lea.sflag [#allocation5], %s160
        %s162 = sand.u32 %s28, 1
        %s163 = smul.addr %s162, 8
        %s164 = scalar_lea.vmem [#allocation4], %s163
        // Predicated region
        $region33: #{tpu_custom_call.1} parent=31 // pred_check
          %p165 = pneg %p41
        $region34: #{tpu_custom_call.1} parent=31 // pred_check_branch
          %167 = sbr.rel (%p165) target = $region36
        $region35: #{tpu_custom_call.1} parent=31 // pred_region
          %168 = dma.done %s161, 128
        $region36: #{tpu_custom_call.1} parent=31 // pred_fallthru
          _
        %s169 = sand.u32 %s28, 1
        %s170 = scalar_lea.sflag [#allocation5], %s169
        %s171 = sand.u32 %s28, 1
        %s172 = smul.addr %s171, 8
        %s173 = scalar_lea.vmem [#allocation4], %s172
        %p174 = pneg %p41
        %p175 = pneg %p38
        %p176 = pneg %p62
        %p177 = pneg %p59
        %p178 = pneg %p83
        %p179 = pneg %p80
        %p180 = pneg %p109
        %p181 = pneg %p106
        %s182 = sand.u32 %s96, 1
        %s183 = scalar_lea.sflag [#allocation6], %s182
        %s184 = sand.u32 %s96, 1
        %s185 = smul.addr %s184, 8
        %s186 = scalar_lea.vmem [#allocation7], %s185
        %187 = vst [vmem:[#allocation2] sm:$0xf] 0.0
        %188 = vst [vmem:[#allocation2 + $0xc] sm:$0xf] 0.0
        %v189 = vlaneseq
        %v190 = vand.u32 %v189, 127
        %v191 = vadd.s32 %v190, 128
        %vm192 = vcmp.lt.s32.totalorder %v190, 0
        %v193 = vsub.s32 0, %v190
        %v194 = vsel %vm192, %v193, %v190
        %v195 = vshrl.u32 %v194, 4
        %v196 = vand.u32 %v194, 15
        %v197 = vsub.s32 0, %v196
        %v198 = vsel %vm192, %v197, %v196
        %vm199 = vcmp.lt.s32.totalorder %v191, 0
        %v200 = vsub.s32 0, %v191
        %v201 = vsel %vm199, %v200, %v191
        %v202 = vshrl.u32 %v201, 4
        %v203 = vand.u32 %v201, 15
        %v204 = vsub.s32 0, %v203
        %v205 = vsel %vm199, %v204, %v203
        %vm206 = vcmp.ne.s32.totalorder %v198, 0
        %vm207 = vcmp.ne.s32.totalorder %v205, 0
        %vm208 = vcmp.lt.s32.totalorder %v198, 0
        %vm209 = vcmp.lt.s32.totalorder %v205, 0
        %vm210 = vmand %vm208, %vm206
        %vm211 = vmand %vm209, %vm207
        %v212 = vadd.s32 %v198, 16
        %v213 = vadd.s32 %v205, 16
        %v214 = vsel %vm210, %v212, %v198
        %v215 = vsel %vm211, %v213, %v205
        %vm216 = vcmp.ge.s32.totalorder %v214, 2
        %vm217 = vcmp.ge.s32.totalorder %v215, 2
        %vm218 = vcmp.lt.s32.totalorder %v214, 14
        %vm219 = vcmp.lt.s32.totalorder %v215, 14
        %vm220 = vcmp.ge.s32.totalorder %v214, 4
        %vm221 = vcmp.ge.s32.totalorder %v215, 4
        %vm222 = vcmp.lt.s32.totalorder %v214, 12
        %vm223 = vcmp.lt.s32.totalorder %v215, 12
        %v224 = vld [vmem:[%s164] sm:$0xff]
        %225 = vst [vmem:[#allocation2 + $0x4] sm:$0xff] %v224
        %v226 = vld [vmem:[#allocation2] sm:$0xff]
        %v227 = vld [vmem:[#allocation2 + $0x8] sm:$0xf]
        %v228 = vsel %vm216, 1, 0
        %v229 = vsel %vm217, 1, 0
        %vm230 = vcmp.eq.s32.totalorder %v228, 1
        %vm231 = vcmp.eq.s32.totalorder %v229, 1
        %v234 = vcombine.high %v226, %v226
        %235 = vrot.lane.b32.xlu0 %v226, 34
        %v236 = vpop.permute.xlu0 %235
        %237 = vrot.lane.b32.xlu0 %v234, 34
        %v238 = vpop.permute.xlu0 %237
        %239 = vrot.lane.b32.xlu0 %v227, 34
        %v240 = vpop.permute.xlu0 %239
        %vm241 = vcmask 277504
        %v242 = vsel %vm241, %v236, %v238
        %v243 = vsel %vm241, %v238, %v240
        %v246 = vsel %vm230, %v242, 0.0
        %v247 = vsel %vm231, %v243, 0.0
        %248 = vst [vmem:[#allocation3] sm:$0xf] %v246
        %249 = vst [vmem:[#allocation3 + $0x8] sm:$0xf] %v247
        %v250 = vld [vmem:[#allocation2] sm:$0xff]
        %v251 = vld [vmem:[#allocation2 + $0x8] sm:$0xf]
        %v254 = vcombine.low %v250, %v250
        %v255 = vcombine.low %v251, %v251
        %256 = vrot.lane.b32.xlu0 %v254, 32
        %v257 = vpop.permute.xlu0 %256
        %258 = vrot.lane.b32.xlu0 %v250, 32
        %v259 = vpop.permute.xlu0 %258
        %260 = vrot.lane.b32.xlu0 %v255, 32
        %v261 = vpop.permute.xlu0 %260
        %vm262 = vcmask 261120
        %v263 = vsel %vm262, %v257, %v259
        %v264 = vsel %vm262, %v259, %v261
        %267 = vst [vmem:[#allocation3] sm:$0xf0] %v263
        %268 = vst [vmem:[#allocation3 + $0x8] sm:$0xf0] %v264
        %v269 = vld [vmem:[#allocation2] sm:$0xff]
        %v270 = vld [vmem:[#allocation2 + $0x8] sm:$0xf]
        %v271 = vsel %vm218, 1, 0
        %v272 = vsel %vm219, 1, 0
        %vm273 = vcmp.eq.s32.totalorder %v271, 1
        %vm274 = vcmp.eq.s32.totalorder %v272, 1
        %v277 = vcombine.high %v269, %v269
        %278 = vrot.lane.b32.xlu0 %v269, 30
        %v279 = vpop.permute.xlu0 %278
        %280 = vrot.lane.b32.xlu0 %v277, 30
        %v281 = vpop.permute.xlu0 %280
        %282 = vrot.lane.b32.xlu0 %v270, 30
        %v283 = vpop.permute.xlu0 %282
        %vm284 = vcmask 244736
        %v285 = vsel %vm284, %v279, %v281
        %v286 = vsel %vm284, %v281, %v283
        %v289 = vsel %vm273, %v285, 0.0
        %v290 = vsel %vm274, %v286, 0.0
        %291 = vst [vmem:[#allocation3 + $0x10] sm:$0xf] %v289
        %292 = vst [vmem:[#allocation3 + $0x18] sm:$0xf] %v290
        %v293 = vld [vmem:[#allocation2] sm:$0xff]
        %v294 = vld [vmem:[#allocation2 + $0x8] sm:$0xf]
        %v297 = vcombine.high %v293, %v293
        %298 = vrot.lane.b32.xlu0 %v293, 2
        %v299 = vpop.permute.xlu0 %298
        %300 = vrot.lane.b32.xlu0 %v297, 2
        %v301 = vpop.permute.xlu0 %300
        %302 = vrot.lane.b32.xlu0 %v294, 2
        %v303 = vpop.permute.xlu0 %302
        %vm304 = vcmask 15360
        %v305 = vsel %vm304, %v299, %v301
        %v306 = vsel %vm304, %v301, %v303
        %v309 = vsel %vm230, %v305, 0.0
        %v310 = vsel %vm231, %v306, 0.0
        %v313 = vrot.slane %v309, 4
        %v314 = vrot.slane %v310, 4
        %317 = vst [vmem:[#allocation3 + $0x10] sm:$0xf0] %v313
        %318 = vst [vmem:[#allocation3 + $0x18] sm:$0xf0] %v314
        %v320 = vcombine.high %v224, %v224
        %322 = vst [vmem:[#allocation3 + $0x20] sm:$0xf] %v224
        %323 = vst [vmem:[#allocation3 + $0x28] sm:$0xf] %v320
        %v324 = vld [vmem:[#allocation2 + $0x4] sm:$0xff]
        %v325 = vld [vmem:[#allocation2 + $0xc] sm:$0xf]
        %v328 = vcombine.high %v324, %v324
        %329 = vrot.lane.b32.xlu0 %v324, 126
        %v330 = vpop.permute.xlu0 %329
        %331 = vrot.lane.b32.xlu0 %v328, 126
        %v332 = vpop.permute.xlu0 %331
        %333 = vrot.lane.b32.xlu0 %v325, 126
        %v334 = vpop.permute.xlu0 %333
        %vm335 = vcmask 1031168
        %v336 = vsel %vm335, %v330, %v332
        %v337 = vsel %vm335, %v332, %v334
        %v340 = vsel %vm273, %v336, 0.0
        %v341 = vsel %vm274, %v337, 0.0
        %v344 = vrot.slane %v340, 4
        %v345 = vrot.slane %v341, 4
        %348 = vst [vmem:[#allocation3 + $0x20] sm:$0xf0] %v344
        %349 = vst [vmem:[#allocation3 + $0x28] sm:$0xf0] %v345
        %v350 = vld [vmem:[#allocation2 + $0x4] sm:$0xff]
        %v351 = vld [vmem:[#allocation2 + $0xc] sm:$0xf]
        %v354 = vcombine.high %v350, %v350
        %355 = vrot.lane.b32.xlu0 %v350, 98
        %v356 = vpop.permute.xlu0 %355
        %357 = vrot.lane.b32.xlu0 %v354, 98
        %v358 = vpop.permute.xlu0 %357
        %359 = vrot.lane.b32.xlu0 %v351, 98
        %v360 = vpop.permute.xlu0 %359
        %vm361 = vcmask 801792
        %v362 = vsel %vm361, %v356, %v358
        %v363 = vsel %vm361, %v358, %v360
        %v366 = vsel %vm230, %v362, 0.0
        %v367 = vsel %vm231, %v363, 0.0
        %368 = vst [vmem:[#allocation3 + $0x30] sm:$0xf] %v366
        %369 = vst [vmem:[#allocation3 + $0x38] sm:$0xf] %v367
        %v370 = vld [vmem:[#allocation2 + $0x4] sm:$0xff]
        %v371 = vld [vmem:[#allocation2 + $0xc] sm:$0xf]
        %v374 = vcombine.low %v370, %v370
        %v375 = vcombine.low %v371, %v371
        %376 = vrot.lane.b32.xlu0 %v374, 96
        %v377 = vpop.permute.xlu0 %376
        %378 = vrot.lane.b32.xlu0 %v370, 96
        %v379 = vpop.permute.xlu0 %378
        %380 = vrot.lane.b32.xlu0 %v375, 96
        %v381 = vpop.permute.xlu0 %380
        %vm382 = vcmask 785408
        %v383 = vsel %vm382, %v377, %v379
        %v384 = vsel %vm382, %v379, %v381
        %387 = vst [vmem:[#allocation3 + $0x30] sm:$0xf0] %v383
        %388 = vst [vmem:[#allocation3 + $0x38] sm:$0xf0] %v384
        %v389 = vld [vmem:[#allocation2 + $0x4] sm:$0xff]
        %v390 = vld [vmem:[#allocation2 + $0xc] sm:$0xf]
        %v393 = vcombine.high %v389, %v389
        %394 = vrot.lane.b32.xlu0 %v389, 94
        %v395 = vpop.permute.xlu0 %394
        %396 = vrot.lane.b32.xlu0 %v393, 94
        %v397 = vpop.permute.xlu0 %396
        %398 = vrot.lane.b32.xlu0 %v390, 94
        %v399 = vpop.permute.xlu0 %398
        %vm400 = vcmask 769024
        %v401 = vsel %vm400, %v395, %v397
        %v402 = vsel %vm400, %v397, %v399
        %v405 = vsel %vm273, %v401, 0.0
        %v406 = vsel %vm274, %v402, 0.0
        %407 = vst [vmem:[#allocation3 + $0x40] sm:$0xf] %v405
        %408 = vst [vmem:[#allocation3 + $0x48] sm:$0xf] %v406
        %v409 = vld [vmem:[%s1] sm:$0xf]
        %v410 = vld [vmem:[#allocation3] sm:$0xff]
        %v411 = vld [vmem:[#allocation3 + $0x8] sm:$0xff]
        %v412 = vld [vmem:[#allocation3 + $0x10] sm:$0xff]
        %v413 = vld [vmem:[#allocation3 + $0x18] sm:$0xff]
        %v414 = vld [vmem:[#allocation3 + $0x20] sm:$0xff]
        %v415 = vld [vmem:[#allocation3 + $0x28] sm:$0xff]
        %v416 = vld [vmem:[#allocation3 + $0x30] sm:$0xff]
        %v417 = vld [vmem:[#allocation3 + $0x38] sm:$0xff]
        %v418 = vld [vmem:[#allocation3 + $0x40] sm:$0xf]
        %v419 = vld [vmem:[#allocation3 + $0x48] sm:$0xf]
        %v420 = vld [vmem:[%s2] sm:$0xf]
        %422 = vset.pattern.permute.xlu0 0
        %423 = vperm.xlu0 %422, %v420
        %v424 = vpop.permute.xlu0 %423
        %vm426 = vcmask 293888
        %v428 = vsel %vm426, %v409, 0
        %vm430 = vcmask 1043456
        %v432 = vsel %vm430, %v418, 0
        %v435 = vsel %vm430, %v419, 0
        %437 = vmatprep.subr.mxu0 0.0
        %438 = vmatpush1.msra.mxu0 0.0
        %439 = vmatprep.subr.mxu0 0.0
        %440 = vmatpush1.msra.mxu0 0.0
        %441 = vmatprep.subr.mxu0 0.0
        %442 = vmatpush1.msra.mxu0 0.0
        %443 = vmatprep.subr.mxu0 0.0
        %444 = vmatpush1.msra.mxu0 0.0
        %445 = vmatprep.subr.mxu0 0.0
        %446 = vmatpush1.msra.mxu0 0.0
        %447 = vmatprep.subr.mxu0 0.0
        %448 = vmatpush1.msra.mxu0 0.0
        %449 = vmatprep.subr.mxu0 0.0
        %450 = vmatpush1.msra.mxu0 0.0
        %451 = vmatprep.subr.mxu0 0.0
        %452 = vmatpush1.msra.mxu0 0.0
        %453 = vmatprep.subr.mxu0 0.0
        %454 = vmatpush1.msra.mxu0 0.0
        %455 = vmatprep.subr.mxu0 0.0
        %456 = vmatpush1.msra.mxu0 0.0
        %457 = vmatprep.subr.mxu0 0.0
        %458 = vmatpush1.msra.mxu0 0.0
        %459 = vmatprep.subr.mxu0 %v435
        %460 = vmatpush1.msra.mxu0 %v432
        %461 = vmatprep.subr.mxu0 %v417
        %462 = vmatpush1.msra.mxu0 %v416
        %463 = vmatprep.subr.mxu0 %v415
        %464 = vmatpush1.msra.mxu0 %v414
        %465 = vmatprep.subr.mxu0 %v413
        %466 = vmatpush1.msra.mxu0 %v412
        %467 = vmatprep.subr.mxu0 %v411
        %468 = vmatpush1.msra.mxu0 %v410
        %469 = vmatprep.subr.mxu0 0.0
        %470 = vmatpush2.msra.mxu0 0.0
        %471 = vmatprep.subr.mxu0 0.0
        %472 = vmatpush2.msra.mxu0 0.0
        %473 = vmatprep.subr.mxu0 0.0
        %474 = vmatpush2.msra.mxu0 0.0
        %475 = vmatprep.subr.mxu0 0.0
        %476 = vmatpush2.msra.mxu0 0.0
        %477 = vmatprep.subr.mxu0 0.0
        %478 = vmatpush2.msra.mxu0 0.0
        %479 = vmatprep.subr.mxu0 0.0
        %480 = vmatpush2.msra.mxu0 0.0
        %481 = vmatprep.subr.mxu0 0.0
        %482 = vmatpush2.msra.mxu0 0.0
        %483 = vmatprep.subr.mxu0 0.0
        %484 = vmatpush2.msra.mxu0 0.0
        %485 = vmatprep.subr.mxu0 0.0
        %486 = vmatpush2.msra.mxu0 0.0
        %487 = vmatprep.subr.mxu0 0.0
        %488 = vmatpush2.msra.mxu0 0.0
        %489 = vmatprep.subr.mxu0 0.0
        %490 = vmatpush2.msra.mxu0 0.0
        %491 = vmatprep.subr.mxu0 0.0
        %492 = vmatpush2.msra.mxu0 0.0
        %493 = vmatprep.subr.mxu0 0.0
        %494 = vmatpush2.msra.mxu0 0.0
        %495 = vmatprep.subr.mxu0 0.0
        %496 = vmatpush2.msra.mxu0 0.0
        %497 = vmatprep.subr.mxu0 0.0
        %498 = vmatpush2.msra.mxu0 0.0
        %499 = vmatprep.subr.mxu0 0.0
        %500 = vmatpush2.msra.mxu0 0.0
        %501 = vmatprep.mubr.f32.mxu0 0.0
        %502 = vmatmul.mubr.f32.gmra.mxu0 %v428
        %v503 = vpop.f32.mrf.mxu0
        %v504 = vadd.f32 %v424, %v503
        %v505 = vpop.f32.mrf.mxu0
        %v506 = vadd.f32 %v424, %v505
        %507 = vdwg.mxu0
        %v508 = vmax.f32 %v504, 0.0
        %v509 = vmax.f32 %v506, 0.0
        %v512 = vcombine.low %v508, %v509
        %514 = vst [vmem:[#allocation2 + $0x4] sm:$0xff] %v512
        %v515 = vld [vmem:[#allocation2] sm:$0xff]
        %v516 = vld [vmem:[#allocation2 + $0x8] sm:$0xf]
        %v517 = vsel %vm220, 1, 0
        %v518 = vsel %vm221, 1, 0
        %vm519 = vcmp.eq.s32.totalorder %v517, 1
        %vm520 = vcmp.eq.s32.totalorder %v518, 1
        %v523 = vcombine.high %v515, %v515
        %524 = vrot.lane.b32.xlu0 %v515, 68
        %v525 = vpop.permute.xlu0 %524
        %526 = vrot.lane.b32.xlu0 %v523, 68
        %v527 = vpop.permute.xlu0 %526
        %528 = vrot.lane.b32.xlu0 %v516, 68
        %v529 = vpop.permute.xlu0 %528
        %vm530 = vcmask 556032
        %v531 = vsel %vm530, %v525, %v527
        %v532 = vsel %vm530, %v527, %v529
        %v535 = vsel %vm519, %v531, 0.0
        %v536 = vsel %vm520, %v532, 0.0
        %537 = vst [vmem:[#allocation3] sm:$0xf] %v535
        %538 = vst [vmem:[#allocation3 + $0x8] sm:$0xf] %v536
        %v539 = vld [vmem:[#allocation2] sm:$0xff]
        %v540 = vld [vmem:[#allocation2 + $0x8] sm:$0xf]
        %v543 = vcombine.low %v539, %v539
        %v544 = vcombine.low %v540, %v540
        %545 = vrot.lane.b32.xlu0 %v543, 64
        %v546 = vpop.permute.xlu0 %545
        %547 = vrot.lane.b32.xlu0 %v539, 64
        %v548 = vpop.permute.xlu0 %547
        %549 = vrot.lane.b32.xlu0 %v544, 64
        %v550 = vpop.permute.xlu0 %549
        %vm551 = vcmask 523264
        %v552 = vsel %vm551, %v546, %v548
        %v553 = vsel %vm551, %v548, %v550
        %556 = vst [vmem:[#allocation3] sm:$0xf0] %v552
        %557 = vst [vmem:[#allocation3 + $0x8] sm:$0xf0] %v553
        %v558 = vld [vmem:[#allocation2] sm:$0xff]
        %v559 = vld [vmem:[#allocation2 + $0x8] sm:$0xf]
        %v560 = vsel %vm222, 1, 0
        %v561 = vsel %vm223, 1, 0
        %vm562 = vcmp.eq.s32.totalorder %v560, 1
        %vm563 = vcmp.eq.s32.totalorder %v561, 1
        %v566 = vcombine.high %v558, %v558
        %567 = vrot.lane.b32.xlu0 %v558, 60
        %v568 = vpop.permute.xlu0 %567
        %569 = vrot.lane.b32.xlu0 %v566, 60
        %v570 = vpop.permute.xlu0 %569
        %571 = vrot.lane.b32.xlu0 %v559, 60
        %v572 = vpop.permute.xlu0 %571
        %vm573 = vcmask 490496
        %v574 = vsel %vm573, %v568, %v570
        %v575 = vsel %vm573, %v570, %v572
        %v578 = vsel %vm562, %v574, 0.0
        %v579 = vsel %vm563, %v575, 0.0
        %580 = vst [vmem:[#allocation3 + $0x10] sm:$0xf] %v578
        %581 = vst [vmem:[#allocation3 + $0x18] sm:$0xf] %v579
        %v582 = vld [vmem:[#allocation2] sm:$0xff]
        %v583 = vld [vmem:[#allocation2 + $0x8] sm:$0xf]
        %v586 = vcombine.high %v582, %v582
        %587 = vrot.lane.b32.xlu0 %v582, 4
        %v588 = vpop.permute.xlu0 %587
        %589 = vrot.lane.b32.xlu0 %v586, 4
        %v590 = vpop.permute.xlu0 %589
        %591 = vrot.lane.b32.xlu0 %v583, 4
        %v592 = vpop.permute.xlu0 %591
        %vm593 = vcmask 31744
        %v594 = vsel %vm593, %v588, %v590
        %v595 = vsel %vm593, %v590, %v592
        %v598 = vsel %vm519, %v594, 0.0
        %v599 = vsel %vm520, %v595, 0.0
        %v602 = vrot.slane %v598, 4
        %v603 = vrot.slane %v599, 4
        %606 = vst [vmem:[#allocation3 + $0x10] sm:$0xf0] %v602
        %607 = vst [vmem:[#allocation3 + $0x18] sm:$0xf0] %v603
        %608 = vst [vmem:[#allocation3 + $0x20] sm:$0xf] %v508
        %609 = vst [vmem:[#allocation3 + $0x28] sm:$0xf] %v509
        %v610 = vld [vmem:[#allocation2 + $0x4] sm:$0xff]
        %v611 = vld [vmem:[#allocation2 + $0xc] sm:$0xf]
        %v614 = vcombine.high %v610, %v610
        %615 = vrot.lane.b32.xlu0 %v610, 124
        %v616 = vpop.permute.xlu0 %615
        %617 = vrot.lane.b32.xlu0 %v614, 124
        %v618 = vpop.permute.xlu0 %617
        %619 = vrot.lane.b32.xlu0 %v611, 124
        %v620 = vpop.permute.xlu0 %619
        %vm621 = vcmask 1014784
        %v622 = vsel %vm621, %v616, %v618
        %v623 = vsel %vm621, %v618, %v620
        %v626 = vsel %vm562, %v622, 0.0
        %v627 = vsel %vm563, %v623, 0.0
        %v630 = vrot.slane %v626, 4
        %v631 = vrot.slane %v627, 4
        %634 = vst [vmem:[#allocation3 + $0x20] sm:$0xf0] %v630
        %635 = vst [vmem:[#allocation3 + $0x28] sm:$0xf0] %v631
        %v636 = vld [vmem:[#allocation2 + $0x4] sm:$0xff]
        %v637 = vld [vmem:[#allocation2 + $0xc] sm:$0xf]
        %v640 = vcombine.high %v636, %v636
        %641 = vrot.lane.b32.xlu0 %v636, 68
        %v642 = vpop.permute.xlu0 %641
        %643 = vrot.lane.b32.xlu0 %v640, 68
        %v644 = vpop.permute.xlu0 %643
        %645 = vrot.lane.b32.xlu0 %v637, 68
        %v646 = vpop.permute.xlu0 %645
        %v647 = vsel %vm530, %v642, %v644
        %v648 = vsel %vm530, %v644, %v646
        %v651 = vsel %vm519, %v647, 0.0
        %v652 = vsel %vm520, %v648, 0.0
        %653 = vst [vmem:[#allocation3 + $0x30] sm:$0xf] %v651
        %654 = vst [vmem:[#allocation3 + $0x38] sm:$0xf] %v652
        %v655 = vld [vmem:[#allocation2 + $0x4] sm:$0xff]
        %v656 = vld [vmem:[#allocation2 + $0xc] sm:$0xf]
        %v659 = vcombine.low %v655, %v655
        %v660 = vcombine.low %v656, %v656
        %661 = vrot.lane.b32.xlu0 %v659, 64
        %v662 = vpop.permute.xlu0 %661
        %663 = vrot.lane.b32.xlu0 %v655, 64
        %v664 = vpop.permute.xlu0 %663
        %665 = vrot.lane.b32.xlu0 %v660, 64
        %v666 = vpop.permute.xlu0 %665
        %v667 = vsel %vm551, %v662, %v664
        %v668 = vsel %vm551, %v664, %v666
        %671 = vst [vmem:[#allocation3 + $0x30] sm:$0xf0] %v667
        %672 = vst [vmem:[#allocation3 + $0x38] sm:$0xf0] %v668
        %v673 = vld [vmem:[#allocation2 + $0x4] sm:$0xff]
        %v674 = vld [vmem:[#allocation2 + $0xc] sm:$0xf]
        %v677 = vcombine.high %v673, %v673
        %678 = vrot.lane.b32.xlu0 %v673, 60
        %v679 = vpop.permute.xlu0 %678
        %680 = vrot.lane.b32.xlu0 %v677, 60
        %v681 = vpop.permute.xlu0 %680
        %682 = vrot.lane.b32.xlu0 %v674, 60
        %v683 = vpop.permute.xlu0 %682
        %v684 = vsel %vm573, %v679, %v681
        %v685 = vsel %vm573, %v681, %v683
        %v688 = vsel %vm562, %v684, 0.0
        %v689 = vsel %vm563, %v685, 0.0
        %690 = vst [vmem:[#allocation3 + $0x40] sm:$0xf] %v688
        %691 = vst [vmem:[#allocation3 + $0x48] sm:$0xf] %v689
        %s692 = scalar_lea.vmem %s1, 4
        %v693 = vld [vmem:[%s692] sm:$0xf]
        %v694 = vld [vmem:[#allocation3] sm:$0xff]
        %v695 = vld [vmem:[#allocation3 + $0x8] sm:$0xff]
        %v696 = vld [vmem:[#allocation3 + $0x10] sm:$0xff]
        %v697 = vld [vmem:[#allocation3 + $0x18] sm:$0xff]
        %v698 = vld [vmem:[#allocation3 + $0x20] sm:$0xff]
        %v699 = vld [vmem:[#allocation3 + $0x28] sm:$0xff]
        %v700 = vld [vmem:[#allocation3 + $0x30] sm:$0xff]
        %v701 = vld [vmem:[#allocation3 + $0x38] sm:$0xff]
        %v702 = vld [vmem:[#allocation3 + $0x40] sm:$0xf]
        %v703 = vld [vmem:[#allocation3 + $0x48] sm:$0xf]
        %s704 = scalar_lea.vmem %s2, 4
        %v705 = vld [vmem:[%s704] sm:$0xf]
        %707 = vset.pattern.permute.xlu0 0
        %708 = vperm.xlu0 %707, %v705
        %v709 = vpop.permute.xlu0 %708
        %v712 = vsel %vm426, %v693, 0
        %v715 = vsel %vm430, %v702, 0
        %v718 = vsel %vm430, %v703, 0
        %720 = vmatprep.subr.mxu0 0.0
        %721 = vmatpush1.msra.mxu0 0.0
        %722 = vmatprep.subr.mxu0 0.0
        %723 = vmatpush1.msra.mxu0 0.0
        %724 = vmatprep.subr.mxu0 0.0
        %725 = vmatpush1.msra.mxu0 0.0
        %726 = vmatprep.subr.mxu0 0.0
        %727 = vmatpush1.msra.mxu0 0.0
        %728 = vmatprep.subr.mxu0 0.0
        %729 = vmatpush1.msra.mxu0 0.0
        %730 = vmatprep.subr.mxu0 0.0
        %731 = vmatpush1.msra.mxu0 0.0
        %732 = vmatprep.subr.mxu0 0.0
        %733 = vmatpush1.msra.mxu0 0.0
        %734 = vmatprep.subr.mxu0 0.0
        %735 = vmatpush1.msra.mxu0 0.0
        %736 = vmatprep.subr.mxu0 0.0
        %737 = vmatpush1.msra.mxu0 0.0
        %738 = vmatprep.subr.mxu0 0.0
        %739 = vmatpush1.msra.mxu0 0.0
        %740 = vmatprep.subr.mxu0 0.0
        %741 = vmatpush1.msra.mxu0 0.0
        %742 = vmatprep.subr.mxu0 %v718
        %743 = vmatpush1.msra.mxu0 %v715
        %744 = vmatprep.subr.mxu0 %v701
        %745 = vmatpush1.msra.mxu0 %v700
        %746 = vmatprep.subr.mxu0 %v699
        %747 = vmatpush1.msra.mxu0 %v698
        %748 = vmatprep.subr.mxu0 %v697
        %749 = vmatpush1.msra.mxu0 %v696
        %750 = vmatprep.subr.mxu0 %v695
        %751 = vmatpush1.msra.mxu0 %v694
        %752 = vmatprep.subr.mxu0 0.0
        %753 = vmatpush2.msra.mxu0 0.0
        %754 = vmatprep.subr.mxu0 0.0
        %755 = vmatpush2.msra.mxu0 0.0
        %756 = vmatprep.subr.mxu0 0.0
        %757 = vmatpush2.msra.mxu0 0.0
        %758 = vmatprep.subr.mxu0 0.0
        %759 = vmatpush2.msra.mxu0 0.0
        %760 = vmatprep.subr.mxu0 0.0
        %761 = vmatpush2.msra.mxu0 0.0
        %762 = vmatprep.subr.mxu0 0.0
        %763 = vmatpush2.msra.mxu0 0.0
        %764 = vmatprep.subr.mxu0 0.0
        %765 = vmatpush2.msra.mxu0 0.0
        %766 = vmatprep.subr.mxu0 0.0
        %767 = vmatpush2.msra.mxu0 0.0
        %768 = vmatprep.subr.mxu0 0.0
        %769 = vmatpush2.msra.mxu0 0.0
        %770 = vmatprep.subr.mxu0 0.0
        %771 = vmatpush2.msra.mxu0 0.0
        %772 = vmatprep.subr.mxu0 0.0
        %773 = vmatpush2.msra.mxu0 0.0
        %774 = vmatprep.subr.mxu0 0.0
        %775 = vmatpush2.msra.mxu0 0.0
        %776 = vmatprep.subr.mxu0 0.0
        %777 = vmatpush2.msra.mxu0 0.0
        %778 = vmatprep.subr.mxu0 0.0
        %779 = vmatpush2.msra.mxu0 0.0
        %780 = vmatprep.subr.mxu0 0.0
        %781 = vmatpush2.msra.mxu0 0.0
        %782 = vmatprep.subr.mxu0 0.0
        %783 = vmatpush2.msra.mxu0 0.0
        %784 = vmatprep.mubr.f32.mxu0 0.0
        %785 = vmatmul.mubr.f32.gmra.mxu0 %v712
        %v786 = vpop.f32.mrf.mxu0
        %v787 = vadd.f32 %v709, %v786
        %v788 = vpop.f32.mrf.mxu0
        %v789 = vadd.f32 %v709, %v788
        %790 = vdwg.mxu0
        %v791 = vmax.f32 %v787, 0.0
        %v792 = vmax.f32 %v789, 0.0
        %v795 = vcombine.low %v791, %v792
        %797 = vst [vmem:[#allocation2 + $0x4] sm:$0xff] %v795
        %v798 = vld [vmem:[#allocation2] sm:$0xff]
        %v799 = vld [vmem:[#allocation2 + $0x8] sm:$0xf]
        %v802 = vcombine.high %v798, %v798
        %803 = vrot.lane.b32.xlu0 %v798, 34
        %v804 = vpop.permute.xlu0 %803
        %805 = vrot.lane.b32.xlu0 %v802, 34
        %v806 = vpop.permute.xlu0 %805
        %807 = vrot.lane.b32.xlu0 %v799, 34
        %v808 = vpop.permute.xlu0 %807
        %v809 = vsel %vm241, %v804, %v806
        %v810 = vsel %vm241, %v806, %v808
        %v813 = vsel %vm230, %v809, 0.0
        %v814 = vsel %vm231, %v810, 0.0
        %815 = vst [vmem:[#allocation3] sm:$0xf] %v813
        %816 = vst [vmem:[#allocation3 + $0x8] sm:$0xf] %v814
        %v817 = vld [vmem:[#allocation2] sm:$0xff]
        %v818 = vld [vmem:[#allocation2 + $0x8] sm:$0xf]
        %v821 = vcombine.low %v817, %v817
        %v822 = vcombine.low %v818, %v818
        %823 = vrot.lane.b32.xlu0 %v821, 32
        %v824 = vpop.permute.xlu0 %823
        %825 = vrot.lane.b32.xlu0 %v817, 32
        %v826 = vpop.permute.xlu0 %825
        %827 = vrot.lane.b32.xlu0 %v822, 32
        %v828 = vpop.permute.xlu0 %827
        %v829 = vsel %vm262, %v824, %v826
        %v830 = vsel %vm262, %v826, %v828
        %833 = vst [vmem:[#allocation3] sm:$0xf0] %v829
        %834 = vst [vmem:[#allocation3 + $0x8] sm:$0xf0] %v830
        %v835 = vld [vmem:[#allocation2] sm:$0xff]
        %v836 = vld [vmem:[#allocation2 + $0x8] sm:$0xf]
        %v839 = vcombine.high %v835, %v835
        %840 = vrot.lane.b32.xlu0 %v835, 30
        %v841 = vpop.permute.xlu0 %840
        %842 = vrot.lane.b32.xlu0 %v839, 30
        %v843 = vpop.permute.xlu0 %842
        %844 = vrot.lane.b32.xlu0 %v836, 30
        %v845 = vpop.permute.xlu0 %844
        %v846 = vsel %vm284, %v841, %v843
        %v847 = vsel %vm284, %v843, %v845
        %v850 = vsel %vm273, %v846, 0.0
        %v851 = vsel %vm274, %v847, 0.0
        %852 = vst [vmem:[#allocation3 + $0x10] sm:$0xf] %v850
        %853 = vst [vmem:[#allocation3 + $0x18] sm:$0xf] %v851
        %v854 = vld [vmem:[#allocation2] sm:$0xff]
        %v855 = vld [vmem:[#allocation2 + $0x8] sm:$0xf]
        %v858 = vcombine.high %v854, %v854
        %859 = vrot.lane.b32.xlu0 %v854, 2
        %v860 = vpop.permute.xlu0 %859
        %861 = vrot.lane.b32.xlu0 %v858, 2
        %v862 = vpop.permute.xlu0 %861
        %863 = vrot.lane.b32.xlu0 %v855, 2
        %v864 = vpop.permute.xlu0 %863
        %v865 = vsel %vm304, %v860, %v862
        %v866 = vsel %vm304, %v862, %v864
        %v869 = vsel %vm230, %v865, 0.0
        %v870 = vsel %vm231, %v866, 0.0
        %v873 = vrot.slane %v869, 4
        %v874 = vrot.slane %v870, 4
        %877 = vst [vmem:[#allocation3 + $0x10] sm:$0xf0] %v873
        %878 = vst [vmem:[#allocation3 + $0x18] sm:$0xf0] %v874
        %879 = vst [vmem:[#allocation3 + $0x20] sm:$0xf] %v791
        %880 = vst [vmem:[#allocation3 + $0x28] sm:$0xf] %v792
        %v881 = vld [vmem:[#allocation2 + $0x4] sm:$0xff]
        %v882 = vld [vmem:[#allocation2 + $0xc] sm:$0xf]
        %v885 = vcombine.high %v881, %v881
        %886 = vrot.lane.b32.xlu0 %v881, 126
        %v887 = vpop.permute.xlu0 %886
        %888 = vrot.lane.b32.xlu0 %v885, 126
        %v889 = vpop.permute.xlu0 %888
        %890 = vrot.lane.b32.xlu0 %v882, 126
        %v891 = vpop.permute.xlu0 %890
        %v892 = vsel %vm335, %v887, %v889
        %v893 = vsel %vm335, %v889, %v891
        %v896 = vsel %vm273, %v892, 0.0
        %v897 = vsel %vm274, %v893, 0.0
        %v900 = vrot.slane %v896, 4
        %v901 = vrot.slane %v897, 4
        %904 = vst [vmem:[#allocation3 + $0x20] sm:$0xf0] %v900
        %905 = vst [vmem:[#allocation3 + $0x28] sm:$0xf0] %v901
        %v906 = vld [vmem:[#allocation2 + $0x4] sm:$0xff]
        %v907 = vld [vmem:[#allocation2 + $0xc] sm:$0xf]
        %v910 = vcombine.high %v906, %v906
        %911 = vrot.lane.b32.xlu0 %v906, 98
        %v912 = vpop.permute.xlu0 %911
        %913 = vrot.lane.b32.xlu0 %v910, 98
        %v914 = vpop.permute.xlu0 %913
        %915 = vrot.lane.b32.xlu0 %v907, 98
        %v916 = vpop.permute.xlu0 %915
        %v917 = vsel %vm361, %v912, %v914
        %v918 = vsel %vm361, %v914, %v916
        %v921 = vsel %vm230, %v917, 0.0
        %v922 = vsel %vm231, %v918, 0.0
        %923 = vst [vmem:[#allocation3 + $0x30] sm:$0xf] %v921
        %924 = vst [vmem:[#allocation3 + $0x38] sm:$0xf] %v922
        %v925 = vld [vmem:[#allocation2 + $0x4] sm:$0xff]
        %v926 = vld [vmem:[#allocation2 + $0xc] sm:$0xf]
        %v929 = vcombine.low %v925, %v925
        %v930 = vcombine.low %v926, %v926
        %931 = vrot.lane.b32.xlu0 %v929, 96
        %v932 = vpop.permute.xlu0 %931
        %933 = vrot.lane.b32.xlu0 %v925, 96
        %v934 = vpop.permute.xlu0 %933
        %935 = vrot.lane.b32.xlu0 %v930, 96
        %v936 = vpop.permute.xlu0 %935
        %v937 = vsel %vm382, %v932, %v934
        %v938 = vsel %vm382, %v934, %v936
        %941 = vst [vmem:[#allocation3 + $0x30] sm:$0xf0] %v937
        %942 = vst [vmem:[#allocation3 + $0x38] sm:$0xf0] %v938
        %v943 = vld [vmem:[#allocation2 + $0x4] sm:$0xff]
        %v944 = vld [vmem:[#allocation2 + $0xc] sm:$0xf]
        %v947 = vcombine.high %v943, %v943
        %948 = vrot.lane.b32.xlu0 %v943, 94
        %v949 = vpop.permute.xlu0 %948
        %950 = vrot.lane.b32.xlu0 %v947, 94
        %v951 = vpop.permute.xlu0 %950
        %952 = vrot.lane.b32.xlu0 %v944, 94
        %v953 = vpop.permute.xlu0 %952
        %v954 = vsel %vm400, %v949, %v951
        %v955 = vsel %vm400, %v951, %v953
        %v958 = vsel %vm273, %v954, 0.0
        %v959 = vsel %vm274, %v955, 0.0
        %960 = vst [vmem:[#allocation3 + $0x40] sm:$0xf] %v958
        %961 = vst [vmem:[#allocation3 + $0x48] sm:$0xf] %v959
        %s962 = scalar_lea.vmem %s1, 8
        %v963 = vld [vmem:[%s962] sm:$0xf]
        %v964 = vld [vmem:[#allocation3] sm:$0xff]
        %v965 = vld [vmem:[#allocation3 + $0x8] sm:$0xff]
        %v966 = vld [vmem:[#allocation3 + $0x10] sm:$0xff]
        %v967 = vld [vmem:[#allocation3 + $0x18] sm:$0xff]
        %v968 = vld [vmem:[#allocation3 + $0x20] sm:$0xff]
        %v969 = vld [vmem:[#allocation3 + $0x28] sm:$0xff]
        %v970 = vld [vmem:[#allocation3 + $0x30] sm:$0xff]
        %v971 = vld [vmem:[#allocation3 + $0x38] sm:$0xff]
        %v972 = vld [vmem:[#allocation3 + $0x40] sm:$0xf]
        %v973 = vld [vmem:[#allocation3 + $0x48] sm:$0xf]
        %s974 = scalar_lea.vmem %s2, 8
        %v975 = vld [vmem:[%s974] sm:$0xf]
        %977 = vset.pattern.permute.xlu0 0
        %978 = vperm.xlu0 %977, %v975
        %v979 = vpop.permute.xlu0 %978
        %v982 = vsel %vm426, %v963, 0
        %v985 = vsel %vm430, %v972, 0
        %v988 = vsel %vm430, %v973, 0
        %990 = vmatprep.subr.mxu0 0.0
        %991 = vmatpush1.msra.mxu0 0.0
        %992 = vmatprep.subr.mxu0 0.0
        %993 = vmatpush1.msra.mxu0 0.0
        %994 = vmatprep.subr.mxu0 0.0
        %995 = vmatpush1.msra.mxu0 0.0
        %996 = vmatprep.subr.mxu0 0.0
        %997 = vmatpush1.msra.mxu0 0.0
        %998 = vmatprep.subr.mxu0 0.0
        %999 = vmatpush1.msra.mxu0 0.0
        %1000 = vmatprep.subr.mxu0 0.0
        %1001 = vmatpush1.msra.mxu0 0.0
        %1002 = vmatprep.subr.mxu0 0.0
        %1003 = vmatpush1.msra.mxu0 0.0
        %1004 = vmatprep.subr.mxu0 0.0
        %1005 = vmatpush1.msra.mxu0 0.0
        %1006 = vmatprep.subr.mxu0 0.0
        %1007 = vmatpush1.msra.mxu0 0.0
        %1008 = vmatprep.subr.mxu0 0.0
        %1009 = vmatpush1.msra.mxu0 0.0
        %1010 = vmatprep.subr.mxu0 0.0
        %1011 = vmatpush1.msra.mxu0 0.0
        %1012 = vmatprep.subr.mxu0 %v988
        %1013 = vmatpush1.msra.mxu0 %v985
        %1014 = vmatprep.subr.mxu0 %v971
        %1015 = vmatpush1.msra.mxu0 %v970
        %1016 = vmatprep.subr.mxu0 %v969
        %1017 = vmatpush1.msra.mxu0 %v968
        %1018 = vmatprep.subr.mxu0 %v967
        %1019 = vmatpush1.msra.mxu0 %v966
        %1020 = vmatprep.subr.mxu0 %v965
        %1021 = vmatpush1.msra.mxu0 %v964
        %1022 = vmatprep.subr.mxu0 0.0
        %1023 = vmatpush2.msra.mxu0 0.0
        %1024 = vmatprep.subr.mxu0 0.0
        %1025 = vmatpush2.msra.mxu0 0.0
        %1026 = vmatprep.subr.mxu0 0.0
        %1027 = vmatpush2.msra.mxu0 0.0
        %1028 = vmatprep.subr.mxu0 0.0
        %1029 = vmatpush2.msra.mxu0 0.0
        %1030 = vmatprep.subr.mxu0 0.0
        %1031 = vmatpush2.msra.mxu0 0.0
        %1032 = vmatprep.subr.mxu0 0.0
        %1033 = vmatpush2.msra.mxu0 0.0
        %1034 = vmatprep.subr.mxu0 0.0
        %1035 = vmatpush2.msra.mxu0 0.0
        %1036 = vmatprep.subr.mxu0 0.0
        %1037 = vmatpush2.msra.mxu0 0.0
        %1038 = vmatprep.subr.mxu0 0.0
        %1039 = vmatpush2.msra.mxu0 0.0
        %1040 = vmatprep.subr.mxu0 0.0
        %1041 = vmatpush2.msra.mxu0 0.0
        %1042 = vmatprep.subr.mxu0 0.0
        %1043 = vmatpush2.msra.mxu0 0.0
        %1044 = vmatprep.subr.mxu0 0.0
        %1045 = vmatpush2.msra.mxu0 0.0
        %1046 = vmatprep.subr.mxu0 0.0
        %1047 = vmatpush2.msra.mxu0 0.0
        %1048 = vmatprep.subr.mxu0 0.0
        %1049 = vmatpush2.msra.mxu0 0.0
        %1050 = vmatprep.subr.mxu0 0.0
        %1051 = vmatpush2.msra.mxu0 0.0
        %1052 = vmatprep.subr.mxu0 0.0
        %1053 = vmatpush2.msra.mxu0 0.0
        %1054 = vmatprep.mubr.f32.mxu0 0.0
        %1055 = vmatmul.mubr.f32.gmra.mxu0 %v982
        %v1056 = vpop.f32.mrf.mxu0
        %v1057 = vadd.f32 %v979, %v1056
        %v1058 = vpop.f32.mrf.mxu0
        %v1059 = vadd.f32 %v979, %v1058
        %1060 = vdwg.mxu0
        %v1061 = vmax.f32 %v1057, 0.0
        %v1062 = vmax.f32 %v1059, 0.0
        %v1065 = vcombine.low %v1061, %v1062
        %1067 = vst [vmem:[%s186] sm:$0xff] %v1065
        %s1068 = sand.u32 %s96, 1
        %s1069 = scalar_lea.sflag [#allocation6], %s1068
        %s1070 = sand.u32 %s96, 1
        %s1071 = smul.addr %s1070, 8
        %s1072 = scalar_lea.vmem [#allocation7], %s1071
        // Predicated region
        $region37: #{tpu_custom_call.1} parent=31 // pred_check
          %p1073 = pneg %p106
        $region38: #{tpu_custom_call.1} parent=31 // pred_check_branch
          %1075 = sbr.rel (%p1073) target = $region40
        $region39: #{tpu_custom_call.1} parent=31 // pred_region
          %s1077 = ssub.s32 128, 128
          %1078 = vsyncadd %s1069, %s1077
          %s1079 = smul.addr %s20, 2
          %s1080 = smul.addr %s1079, 64
          %s1081 = scalar_lea.hbm %s3, %s1080
          %s1083 = sshll.u32 %s1072, 4
          %s1084 = int_to_ptr.vmem [resolvable:$true] %s1083
          %1086 = dma.vmem_to_hbm [thread:$0]  %s1084, 128, %s1081, %s1069
        $region40: #{tpu_custom_call.1} parent=31 // pred_fallthru
          _
      $region32: #{tpu_custom_call.1} parent=5 // pred_fallthru
        _
      %p1087 = scmp.le.s32.totalorder 2, %s15
      // Predicated region
      $region41: #{tpu_custom_call.1} parent=5 // pred_check
        %p1088 = pneg %p1087
      $region42: #{tpu_custom_call.1} parent=5 // pred_check_branch
        %1090 = sbr.rel (%p1088) target = $region44
      $region43: #{tpu_custom_call.1} parent=5 // pred_region
        %s1091 = ssub.s32 %s15, 2
        // Predicated region
        $region45: #{tpu_custom_call.1} parent=43 // pred_check
          %p1092 = pneg %p112
        $region46: #{tpu_custom_call.1} parent=43 // pred_check_branch
          %1094 = sbr.rel (%p1092) target = $region48
        $region47: #{tpu_custom_call.1} parent=43 // pred_region
          %s1095 = sand.u32 %s97, 1
          %s1096 = scalar_lea.sflag [#allocation6], %s1095
          %s1097 = sand.u32 %s97, 1
          %s1098 = smul.addr %s1097, 8
          %s1099 = scalar_lea.vmem [#allocation7], %s1098
          %1100 = dma.done %s1096, 128
        $region48: #{tpu_custom_call.1} parent=43 // pred_fallthru
          _
      $region44: #{tpu_custom_call.1} parent=5 // pred_fallthru
        _
    $region6: #{tpu_custom_call.1} parent=1 // loop_footer
      %s19 = sadd.s32 1, %s15
    $region7: #{tpu_custom_call.1} parent=1 // loop_footer_branch
      %14 = sbr.rel target = $region3
    $region8: #{tpu_custom_call.1} parent=1 // loop_exit
      _
    %1101 = vsyncpa [#allocation5], 1
    %s1102 = scalar_lea.sflag [#allocation5], 1
    %1103 = vsyncpa %s1102, 1
    %1104 = vsyncpa [#allocation6], 1
    %s1105 = scalar_lea.sflag [#allocation6], 1
    %1106 = vsyncpa %s1105, 1

</llo_original>
